<compile_context>
chip_gen: v7x
topology: tpu7x:2x2x1
jax: 0.10.0
libtpu: 0.0.40
codegen_flags: <defaults>
</compile_context>

<pallas_src>
import math
import functools

import jax
import jax.numpy as jnp
from jax.experimental import pallas as pl


# ----------------------------------------------------------------------------
# In-kernel helpers
# ----------------------------------------------------------------------------

def _mm(a, w):
    """f32 MXU matmul with f32 accumulation."""
    return jnp.dot(a, w, preferred_element_type=jnp.float32)


def _layernorm(z, g, b, eps):
    mu = jnp.mean(z, axis=-1, keepdims=True)
    zc = z - mu
    var = jnp.mean(zc * zc, axis=-1, keepdims=True)
    return zc * jax.lax.rsqrt(var + eps) * g + b


# ----------------------------------------------------------------------------
# Single fused kernel: PE add -> n_layer encoder layers -> final LN -> decoder
# ----------------------------------------------------------------------------

def _transformer_kernel(x_ref, pe_ref, mask_ref,
                        wqkv_ref, bqkv_ref, wo_ref, bo_ref,
                        ln1g_ref, ln1b_ref,
                        w1_ref, b1_ref, w2_ref, b2_ref,
                        ln2g_ref, ln2b_ref,
                        fg_ref, fb_ref, dw_ref, db_ref,
                        o_ref, *, n_layer, n_head, d_model, eps):
    """Whole forward for all B*S rows (s-major ordering).

    x_ref   : (N, D)  embeddings, already scaled by sqrt(d_model)
    pe_ref  : (N, D)  positional encodings, replicated per batch
    mask_ref: (N, N)  additive mask (causal + key-padding + cross-batch -1e9)
    o_ref   : (N, V)  logits
    Weights are stacked along a leading layer axis (static Python loop below).
    """
    N = x_ref.shape[0]
    D = d_model
    hd = D // n_head

    h = x_ref[...] + pe_ref[...]             # dropout p=0.0 -> no-op
    mask = mask_ref[...]

    for l in range(n_layer):                 # static unroll, n_layer is small
        # ---- multi-head self-attention (post-norm layer) ----
        qkv = _mm(h, wqkv_ref[l]) + bqkv_ref[l]      # (N, 3D); Q pre-scaled 1/sqrt(hd)
        wo = wo_ref[l]                               # (D, D)
        attn = jnp.zeros((N, D), jnp.float32)
        for hh in range(n_head):                     # static unroll, n_head small
            q = qkv[:, hh * hd:(hh + 1) * hd]
            k = qkv[:, D + hh * hd:D + (hh + 1) * hd]
            v = qkv[:, 2 * D + hh * hd:2 * D + (hh + 1) * hd]
            s = jnp.dot(q, k.T, preferred_element_type=jnp.float32) + mask
            s = s - jnp.max(s, axis=-1, keepdims=True)
            p = jnp.exp(s)
            # EUP approx reciprocal instead of a VALU divide
            p = p * pl.reciprocal(jnp.sum(p, axis=-1, keepdims=True), approx=True)
            # fold the head output straight into the out-projection (no concat)
            attn = attn + _mm(_mm(p, v), wo[hh * hd:(hh + 1) * hd, :])
        attn = attn + bo_ref[l]

        h1 = _layernorm(h + attn, ln1g_ref[l], ln1b_ref[l], eps)

        # ---- feed-forward (d_ff zero-padded to a 128-lane multiple) ----
        ff = jnp.maximum(_mm(h1, w1_ref[l]) + b1_ref[l], 0.0)
        ff = _mm(ff, w2_ref[l]) + b2_ref[l]
        h = _layernorm(h1 + ff, ln2g_ref[l], ln2b_ref[l], eps)

    # ---- final encoder LayerNorm + decoder Linear ----
    hn = _layernorm(h, fg_ref[...], fb_ref[...], eps)
    o_ref[...] = _mm(hn, dw_ref[...]) + db_ref[...]


def transformer_pallas(x, pe_rows, mask, pk, eps=1e-5):
    """One fused pallas_call over the whole forward. Returns (N, V) logits."""
    N, D = x.shape
    V = pk["dec_w"].shape[1]
    n_layer = pk["wqkv"].shape[0]
    kernel = functools.partial(_transformer_kernel, n_layer=n_layer,
                               n_head=pk["n_head"], d_model=D, eps=eps)
    # No grid: single invocation, every operand is a full-array VMEM block.
    return pl.pallas_call(
        kernel,
        out_shape=jax.ShapeDtypeStruct((N, V), jnp.float32),
    )(x, pe_rows, mask,
      pk["wqkv"], pk["bqkv"], pk["wo"], pk["bo"],
      pk["ln1g"], pk["ln1b"],
      pk["w1"], pk["b1"], pk["w2"], pk["b2"],
      pk["ln2g"], pk["ln2b"],
      pk["fin_g"], pk["fin_b"], pk["dec_w"], pk["dec_b"])


# ----------------------------------------------------------------------------
# Model glue (plain JAX): params, positional encoding, embedding gather, mask
# ----------------------------------------------------------------------------

def make_positional_encoding(d_model, max_len):
    position = jnp.arange(max_len, dtype=jnp.float32)[:, None]
    div_term = jnp.exp(
        jnp.arange(0, d_model, 2, dtype=jnp.float32) * (-math.log(10000.0) / d_model)
    )
    pe = jnp.zeros((max_len, d_model), dtype=jnp.float32)
    pe = pe.at[:, 0::2].set(jnp.sin(position * div_term))
    pe = pe.at[:, 1::2].set(jnp.cos(position * div_term))
    return pe  # [max_len, d_model]


def init_params(key, n_tokens, n_layer, d_model, d_ff, pad_idx=0):
    initrange = 0.1

    def uni(k, shape):
        return jax.random.uniform(k, shape, jnp.float32, -initrange, initrange)

    keys = jax.random.split(key, 2 + 6 * n_layer)
    ki = iter(keys)

    emb = uni(next(ki), (n_tokens, d_model))
    emb = emb.at[pad_idx].set(0.0)  # padding_idx row is zero

    layers = []
    for _ in range(n_layer):
        layers.append(dict(
            in_proj_w=uni(next(ki), (d_model, 3 * d_model)),   # stored as x @ W
            in_proj_b=jnp.zeros((3 * d_model,), jnp.float32),
            out_proj_w=uni(next(ki), (d_model, d_model)),
            out_proj_b=jnp.zeros((d_model,), jnp.float32),
            ln1_g=jnp.ones((d_model,), jnp.float32),
            ln1_b=jnp.zeros((d_model,), jnp.float32),
            ff1_w=uni(next(ki), (d_model, d_ff)),
            ff1_b=uni(next(ki), (d_ff,)),
            ff2_w=uni(next(ki), (d_ff, d_model)),
            ff2_b=uni(next(ki), (d_model,)),
            ln2_g=jnp.ones((d_model,), jnp.float32),
            ln2_b=jnp.zeros((d_model,), jnp.float32),
        ))

    return dict(
        emb=emb,
        layers=layers,
        final_ln_g=jnp.ones((d_model,), jnp.float32),
        final_ln_b=jnp.zeros((d_model,), jnp.float32),
        dec_w=uni(next(ki), (d_model, n_tokens)),
        dec_b=jnp.zeros((n_tokens,), jnp.float32),
    )


def pack_params(params, n_head):
    """One-time transforms: fold sqrt(d_model) into emb, 1/sqrt(hd) into Q,
    zero-pad d_ff to a 128-lane multiple, stack layers, reshape biases."""
    D = params["emb"].shape[1]
    hd = D // n_head
    L = len(params["layers"])

    def stack(name):
        return jnp.stack([lp[name] for lp in params["layers"]], axis=0)

    # fold attention Q-scaling into the Q columns of in_proj (weight AND bias)
    qscale = jnp.concatenate([
        jnp.full((D,), 1.0 / math.sqrt(hd), jnp.float32),
        jnp.ones((2 * D,), jnp.float32),
    ])
    wqkv = stack("in_proj_w") * qscale[None, None, :]          # (L, D, 3D)
    bqkv = (stack("in_proj_b") * qscale[None, :])[:, None, :]  # (L, 1, 3D)

    # zero-pad the FF hidden dim to a multiple of 128 lanes (exact transform)
    w1 = stack("ff1_w")                                        # (L, D, F)
    b1 = stack("ff1_b")                                        # (L, F)
    w2 = stack("ff2_w")                                        # (L, F, D)
    F = w1.shape[-1]
    Fp = ((F + 127) // 128) * 128
    if Fp != F:
        w1 = jnp.pad(w1, ((0, 0), (0, 0), (0, Fp - F)))
        b1 = jnp.pad(b1, ((0, 0), (0, Fp - F)))
        w2 = jnp.pad(w2, ((0, 0), (0, Fp - F), (0, 0)))

    return dict(
        n_head=n_head,
        d_model=D,
        emb=params["emb"] * math.sqrt(D),                      # fold * sqrt(d_model)
        wqkv=wqkv, bqkv=bqkv,
        wo=stack("out_proj_w"),                                # (L, D, D)
        bo=stack("out_proj_b")[:, None, :],                    # (L, 1, D)
        ln1g=stack("ln1_g")[:, None, :], ln1b=stack("ln1_b")[:, None, :],
        w1=w1, b1=b1[:, None, :], w2=w2, b2=stack("ff2_b")[:, None, :],
        ln2g=stack("ln2_g")[:, None, :], ln2b=stack("ln2_b")[:, None, :],
        fin_g=params["final_ln_g"][None, :], fin_b=params["final_ln_b"][None, :],
        dec_w=params["dec_w"], dec_b=params["dec_b"][None, :],
    )


def transformer_forward(packed, src, src_mask, pe, src_key_padding_mask=None):
    """src: int32 [S, B]; src_mask: additive float [S, S]; returns [S, B, n_tokens]."""
    S, B = src.shape
    D = packed["d_model"]
    V = packed["dec_w"].shape[1]
    N = S * B

    # TODO(synk): embedding gather stays in plain JAX (data-dependent HBM
    # gather); a manual-DMA Pallas gather is not worthwhile at this size.
    # Rows are ordered s-major (row = s*B + b) so the kernel output reshapes
    # straight to [S, B, V] with no transpose.
    x = packed["emb"][src].reshape(N, D)                       # (N, D), pre-scaled
    pe_rows = jnp.repeat(pe[:S], B, axis=0)                    # (N, D), row s*B+b = pe[s]

    # Combined additive mask over folded rows: same-batch blocks carry src_mask
    # (+ optional key-padding); cross-batch entries get -1e9 (exp underflows to 0).
    NEG = jnp.float32(-1e9)
    same_batch = jnp.eye(B, dtype=bool)                        # (B, B)
    m4 = jnp.where(same_batch[None, :, None, :],
                   src_mask.astype(jnp.float32)[:, None, :, None],
                   NEG)                                        # (S, B, S, B)
    if src_key_padding_mask is not None:
        padk = jnp.where(src_key_padding_mask, NEG, 0.0).astype(jnp.float32)  # (B, Sk)
        m4 = m4 + padk.T[None, None, :, :]
    mask = m4.reshape(N, N)

    logits = transformer_pallas(x, pe_rows, mask, packed)      # (N, V)
    return logits.reshape(S, B, V)                             # free metadata reshape


# ----------------------------------------------------------------------------
# Main
# ----------------------------------------------------------------------------

if __name__ == "__main__":
    n_tokens = 64
    n_layer = 2
    n_head = 2
    d_model = 32
    d_ff = 64
    S, B = 8, 2

    key = jax.random.PRNGKey(0)
    k_param, k_src = jax.random.split(key)

    params = init_params(k_param, n_tokens, n_layer, d_model, d_ff, pad_idx=0)
    packed = pack_params(params, n_head)
    pe = make_positional_encoding(d_model, max_len=64)

    src = jax.random.randint(k_src, (S, B), 0, n_tokens, dtype=jnp.int32)
    # causal additive mask (like nn.Transformer.generate_square_subsequent_mask)
    idx = jnp.arange(S)
    src_mask = jnp.where(idx[None, :] <= idx[:, None], 0.0, -1e9).astype(jnp.float32)

    out = transformer_forward(packed, src, src_mask, pe, src_key_padding_mask=None)
    out = jax.block_until_ready(out)
    assert out.shape == (S, B, n_tokens)
    assert bool(jnp.all(jnp.isfinite(out)))
    print("KERNEL_OK")
</pallas_src>

<mosaic_0001>
module attributes {stable_mosaic.version = 11 : i64} {
  func.func @_transformer_kernel(%arg0: memref<16x32xf32, #tpu.memory_space<vmem>>, %arg1: memref<16x32xf32, #tpu.memory_space<vmem>>, %arg2: memref<16x16xf32, #tpu.memory_space<vmem>>, %arg3: memref<2x32x96xf32, #tpu.memory_space<vmem>>, %arg4: memref<2x1x96xf32, #tpu.memory_space<vmem>>, %arg5: memref<2x32x32xf32, #tpu.memory_space<vmem>>, %arg6: memref<2x1x32xf32, #tpu.memory_space<vmem>>, %arg7: memref<2x1x32xf32, #tpu.memory_space<vmem>>, %arg8: memref<2x1x32xf32, #tpu.memory_space<vmem>>, %arg9: memref<2x32x128xf32, #tpu.memory_space<vmem>>, %arg10: memref<2x1x128xf32, #tpu.memory_space<vmem>>, %arg11: memref<2x128x32xf32, #tpu.memory_space<vmem>>, %arg12: memref<2x1x32xf32, #tpu.memory_space<vmem>>, %arg13: memref<2x1x32xf32, #tpu.memory_space<vmem>>, %arg14: memref<2x1x32xf32, #tpu.memory_space<vmem>>, %arg15: memref<1x32xf32, #tpu.memory_space<vmem>>, %arg16: memref<1x32xf32, #tpu.memory_space<vmem>>, %arg17: memref<32x64xf32, #tpu.memory_space<vmem>>, %arg18: memref<1x64xf32, #tpu.memory_space<vmem>>, %arg19: memref<16x64xf32, #tpu.memory_space<vmem>>) attributes {dimension_semantics = [], scalar_prefetch = 0 : i64, scratch_operands = 0 : i64, tpu.core_type = #tpu.core_type<tc>} {
    %c0 = arith.constant 0 : index
    %c0_0 = arith.constant 0 : index
    %0 = vector.load %arg0[%c0, %c0_0] : memref<16x32xf32, #tpu.memory_space<vmem>>, vector<16x32xf32>
    %c0_1 = arith.constant 0 : index
    %c0_2 = arith.constant 0 : index
    %1 = vector.load %arg1[%c0_1, %c0_2] : memref<16x32xf32, #tpu.memory_space<vmem>>, vector<16x32xf32>
    %2 = arith.addf %0, %1 : vector<16x32xf32>
    %c0_3 = arith.constant 0 : index
    %c0_4 = arith.constant 0 : index
    %3 = vector.load %arg2[%c0_3, %c0_4] : memref<16x16xf32, #tpu.memory_space<vmem>>, vector<16x16xf32>
    %c0_5 = arith.constant 0 : index
    %c0_6 = arith.constant 0 : index
    %c0_7 = arith.constant 0 : index
    %4 = vector.load %arg3[%c0_5, %c0_6, %c0_7] : memref<2x32x96xf32, #tpu.memory_space<vmem>>, vector<1x32x96xf32>
    %5 = vector.shape_cast %4 : vector<1x32x96xf32> to vector<32x96xf32>
    %cst = arith.constant dense<0.000000e+00> : vector<16x96xf32>
    %6 = tpu.matmul %2, %5, %cst {dimension_numbers = #tpu.dot_dimension_numbers<[1], [0], [0], [1], [0, 0, 1, 1], [], []>} : vector<16x32xf32>, vector<32x96xf32>, vector<16x96xf32> -> vector<16x96xf32>
    %c0_8 = arith.constant 0 : index
    %c0_9 = arith.constant 0 : index
    %c0_10 = arith.constant 0 : index
    %7 = vector.load %arg4[%c0_8, %c0_9, %c0_10] : memref<2x1x96xf32, #tpu.memory_space<vmem>>, vector<1x1x96xf32>
    %8 = vector.shape_cast %7 : vector<1x1x96xf32> to vector<1x96xf32>
    %9 = vector.broadcast %8 : vector<1x96xf32> to vector<16x96xf32>
    %10 = arith.addf %6, %9 : vector<16x96xf32>
    %c0_11 = arith.constant 0 : index
    %c0_12 = arith.constant 0 : index
    %c0_13 = arith.constant 0 : index
    %11 = vector.load %arg5[%c0_11, %c0_12, %c0_13] : memref<2x32x32xf32, #tpu.memory_space<vmem>>, vector<1x32x32xf32>
    %12 = vector.shape_cast %11 : vector<1x32x32xf32> to vector<32x32xf32>
    %cst_14 = arith.constant 0.000000e+00 : f32
    %13 = vector.broadcast %cst_14 : f32 to vector<16x32xf32>
    %14 = vector.extract_strided_slice %10 {offsets = [0, 0], sizes = [16, 16], strides = [1, 1]} : vector<16x96xf32> to vector<16x16xf32>
    %15 = vector.extract_strided_slice %10 {offsets = [0, 32], sizes = [16, 16], strides = [1, 1]} : vector<16x96xf32> to vector<16x16xf32>
    %16 = vector.extract_strided_slice %10 {offsets = [0, 64], sizes = [16, 16], strides = [1, 1]} : vector<16x96xf32> to vector<16x16xf32>
    %17 = tpu.transpose %15, [1, 0] : vector<16x16xf32> -> vector<16x16xf32>
    %cst_15 = arith.constant dense<0.000000e+00> : vector<16x16xf32>
    %18 = tpu.matmul %14, %17, %cst_15 {dimension_numbers = #tpu.dot_dimension_numbers<[1], [0], [0], [1], [0, 0, 1, 1], [], []>} : vector<16x16xf32>, vector<16x16xf32>, vector<16x16xf32> -> vector<16x16xf32>
    %19 = arith.addf %18, %3 : vector<16x16xf32>
    %cst_16 = arith.constant dense<0xFF800000> : vector<16xf32>
    %20 = vector.multi_reduction <maximumf>, %19, %cst_16 [1] : vector<16x16xf32> to vector<16xf32>
    %21 = vector.shape_cast %20 : vector<16xf32> to vector<16x1xf32>
    %22 = vector.broadcast %21 : vector<16x1xf32> to vector<16x16xf32>
    %23 = arith.subf %19, %22 : vector<16x16xf32>
    %24 = math.exp %23 : vector<16x16xf32>
    %cst_17 = arith.constant dense<0.000000e+00> : vector<16xf32>
    %25 = vector.multi_reduction <add>, %24, %cst_17 [1] : vector<16x16xf32> to vector<16xf32>
    %26 = vector.shape_cast %25 : vector<16xf32> to vector<16x1xf32>
    %27 = tpu.reciprocal %26 {approx = true} : vector<16x1xf32> -> vector<16x1xf32>
    %28 = vector.broadcast %27 : vector<16x1xf32> to vector<16x16xf32>
    %29 = arith.mulf %24, %28 : vector<16x16xf32>
    %cst_18 = arith.constant dense<0.000000e+00> : vector<16x16xf32>
    %30 = tpu.matmul %29, %16, %cst_18 {dimension_numbers = #tpu.dot_dimension_numbers<[1], [0], [0], [1], [0, 0, 1, 1], [], []>} : vector<16x16xf32>, vector<16x16xf32>, vector<16x16xf32> -> vector<16x16xf32>
    %31 = vector.extract_strided_slice %12 {offsets = [0, 0], sizes = [16, 32], strides = [1, 1]} : vector<32x32xf32> to vector<16x32xf32>
    %cst_19 = arith.constant dense<0.000000e+00> : vector<16x32xf32>
    %32 = tpu.matmul %30, %31, %cst_19 {dimension_numbers = #tpu.dot_dimension_numbers<[1], [0], [0], [1], [0, 0, 1, 1], [], []>} : vector<16x16xf32>, vector<16x32xf32>, vector<16x32xf32> -> vector<16x32xf32>
    %33 = arith.addf %13, %32 : vector<16x32xf32>
    %34 = vector.extract_strided_slice %10 {offsets = [0, 16], sizes = [16, 16], strides = [1, 1]} : vector<16x96xf32> to vector<16x16xf32>
    %35 = vector.extract_strided_slice %10 {offsets = [0, 48], sizes = [16, 16], strides = [1, 1]} : vector<16x96xf32> to vector<16x16xf32>
    %36 = vector.extract_strided_slice %10 {offsets = [0, 80], sizes = [16, 16], strides = [1, 1]} : vector<16x96xf32> to vector<16x16xf32>
    %37 = tpu.transpose %35, [1, 0] : vector<16x16xf32> -> vector<16x16xf32>
    %cst_20 = arith.constant dense<0.000000e+00> : vector<16x16xf32>
    %38 = tpu.matmul %34, %37, %cst_20 {dimension_numbers = #tpu.dot_dimension_numbers<[1], [0], [0], [1], [0, 0, 1, 1], [], []>} : vector<16x16xf32>, vector<16x16xf32>, vector<16x16xf32> -> vector<16x16xf32>
    %39 = arith.addf %38, %3 : vector<16x16xf32>
    %cst_21 = arith.constant dense<0xFF800000> : vector<16xf32>
    %40 = vector.multi_reduction <maximumf>, %39, %cst_21 [1] : vector<16x16xf32> to vector<16xf32>
    %41 = vector.shape_cast %40 : vector<16xf32> to vector<16x1xf32>
    %42 = vector.broadcast %41 : vector<16x1xf32> to vector<16x16xf32>
    %43 = arith.subf %39, %42 : vector<16x16xf32>
    %44 = math.exp %43 : vector<16x16xf32>
    %cst_22 = arith.constant dense<0.000000e+00> : vector<16xf32>
    %45 = vector.multi_reduction <add>, %44, %cst_22 [1] : vector<16x16xf32> to vector<16xf32>
    %46 = vector.shape_cast %45 : vector<16xf32> to vector<16x1xf32>
    %47 = tpu.reciprocal %46 {approx = true} : vector<16x1xf32> -> vector<16x1xf32>
    %48 = vector.broadcast %47 : vector<16x1xf32> to vector<16x16xf32>
    %49 = arith.mulf %44, %48 : vector<16x16xf32>
    %cst_23 = arith.constant dense<0.000000e+00> : vector<16x16xf32>
    %50 = tpu.matmul %49, %36, %cst_23 {dimension_numbers = #tpu.dot_dimension_numbers<[1], [0], [0], [1], [0, 0, 1, 1], [], []>} : vector<16x16xf32>, vector<16x16xf32>, vector<16x16xf32> -> vector<16x16xf32>
    %51 = vector.extract_strided_slice %12 {offsets = [16, 0], sizes = [16, 32], strides = [1, 1]} : vector<32x32xf32> to vector<16x32xf32>
    %cst_24 = arith.constant dense<0.000000e+00> : vector<16x32xf32>
    %52 = tpu.matmul %50, %51, %cst_24 {dimension_numbers = #tpu.dot_dimension_numbers<[1], [0], [0], [1], [0, 0, 1, 1], [], []>} : vector<16x16xf32>, vector<16x32xf32>, vector<16x32xf32> -> vector<16x32xf32>
    %53 = arith.addf %33, %52 : vector<16x32xf32>
    %c0_25 = arith.constant 0 : index
    %c0_26 = arith.constant 0 : index
    %c0_27 = arith.constant 0 : index
    %54 = vector.load %arg6[%c0_25, %c0_26, %c0_27] : memref<2x1x32xf32, #tpu.memory_space<vmem>>, vector<1x1x32xf32>
    %55 = vector.shape_cast %54 : vector<1x1x32xf32> to vector<1x32xf32>
    %56 = vector.broadcast %55 : vector<1x32xf32> to vector<16x32xf32>
    %57 = arith.addf %53, %56 : vector<16x32xf32>
    %58 = arith.addf %2, %57 : vector<16x32xf32>
    %c0_28 = arith.constant 0 : index
    %c0_29 = arith.constant 0 : index
    %c0_30 = arith.constant 0 : index
    %59 = vector.load %arg7[%c0_28, %c0_29, %c0_30] : memref<2x1x32xf32, #tpu.memory_space<vmem>>, vector<1x1x32xf32>
    %60 = vector.shape_cast %59 : vector<1x1x32xf32> to vector<1x32xf32>
    %c0_31 = arith.constant 0 : index
    %c0_32 = arith.constant 0 : index
    %c0_33 = arith.constant 0 : index
    %61 = vector.load %arg8[%c0_31, %c0_32, %c0_33] : memref<2x1x32xf32, #tpu.memory_space<vmem>>, vector<1x1x32xf32>
    %62 = vector.shape_cast %61 : vector<1x1x32xf32> to vector<1x32xf32>
    %cst_34 = arith.constant dense<0.000000e+00> : vector<16xf32>
    %63 = vector.multi_reduction <add>, %58, %cst_34 [1] : vector<16x32xf32> to vector<16xf32>
    %64 = vector.shape_cast %63 : vector<16xf32> to vector<16x1xf32>
    %cst_35 = arith.constant 3.200000e+01 : f32
    %65 = vector.broadcast %cst_35 : f32 to vector<16x1xf32>
    %66 = arith.divf %64, %65 : vector<16x1xf32>
    %67 = vector.broadcast %66 : vector<16x1xf32> to vector<16x32xf32>
    %68 = arith.subf %58, %67 : vector<16x32xf32>
    %69 = arith.mulf %68, %68 : vector<16x32xf32>
    %cst_36 = arith.constant dense<0.000000e+00> : vector<16xf32>
    %70 = vector.multi_reduction <add>, %69, %cst_36 [1] : vector<16x32xf32> to vector<16xf32>
    %71 = vector.shape_cast %70 : vector<16xf32> to vector<16x1xf32>
    %cst_37 = arith.constant 3.200000e+01 : f32
    %72 = vector.broadcast %cst_37 : f32 to vector<16x1xf32>
    %73 = arith.divf %71, %72 : vector<16x1xf32>
    %cst_38 = arith.constant 9.99999974E-6 : f32
    %74 = vector.broadcast %cst_38 : f32 to vector<16x1xf32>
    %75 = arith.addf %73, %74 : vector<16x1xf32>
    %76 = math.rsqrt %75 : vector<16x1xf32>
    %77 = vector.broadcast %76 : vector<16x1xf32> to vector<16x32xf32>
    %78 = arith.mulf %68, %77 : vector<16x32xf32>
    %79 = vector.broadcast %60 : vector<1x32xf32> to vector<16x32xf32>
    %80 = arith.mulf %78, %79 : vector<16x32xf32>
    %81 = vector.broadcast %62 : vector<1x32xf32> to vector<16x32xf32>
    %82 = arith.addf %80, %81 : vector<16x32xf32>
    %c0_39 = arith.constant 0 : index
    %c0_40 = arith.constant 0 : index
    %c0_41 = arith.constant 0 : index
    %83 = vector.load %arg9[%c0_39, %c0_40, %c0_41] : memref<2x32x128xf32, #tpu.memory_space<vmem>>, vector<1x32x128xf32>
    %84 = vector.shape_cast %83 : vector<1x32x128xf32> to vector<32x128xf32>
    %cst_42 = arith.constant dense<0.000000e+00> : vector<16x128xf32>
    %85 = tpu.matmul %82, %84, %cst_42 {dimension_numbers = #tpu.dot_dimension_numbers<[1], [0], [0], [1], [0, 0, 1, 1], [], []>} : vector<16x32xf32>, vector<32x128xf32>, vector<16x128xf32> -> vector<16x128xf32>
    %c0_43 = arith.constant 0 : index
    %c0_44 = arith.constant 0 : index
    %c0_45 = arith.constant 0 : index
    %86 = vector.load %arg10[%c0_43, %c0_44, %c0_45] : memref<2x1x128xf32, #tpu.memory_space<vmem>>, vector<1x1x128xf32>
    %87 = vector.shape_cast %86 : vector<1x1x128xf32> to vector<1x128xf32>
    %88 = vector.broadcast %87 : vector<1x128xf32> to vector<16x128xf32>
    %89 = arith.addf %85, %88 : vector<16x128xf32>
    %cst_46 = arith.constant 0.000000e+00 : f32
    %90 = vector.broadcast %cst_46 : f32 to vector<16x128xf32>
    %91 = arith.maximumf %89, %90 : vector<16x128xf32>
    %c0_47 = arith.constant 0 : index
    %c0_48 = arith.constant 0 : index
    %c0_49 = arith.constant 0 : index
    %92 = vector.load %arg11[%c0_47, %c0_48, %c0_49] : memref<2x128x32xf32, #tpu.memory_space<vmem>>, vector<1x128x32xf32>
    %93 = vector.shape_cast %92 : vector<1x128x32xf32> to vector<128x32xf32>
    %cst_50 = arith.constant dense<0.000000e+00> : vector<16x32xf32>
    %94 = tpu.matmul %91, %93, %cst_50 {dimension_numbers = #tpu.dot_dimension_numbers<[1], [0], [0], [1], [0, 0, 1, 1], [], []>} : vector<16x128xf32>, vector<128x32xf32>, vector<16x32xf32> -> vector<16x32xf32>
    %c0_51 = arith.constant 0 : index
    %c0_52 = arith.constant 0 : index
    %c0_53 = arith.constant 0 : index
    %95 = vector.load %arg12[%c0_51, %c0_52, %c0_53] : memref<2x1x32xf32, #tpu.memory_space<vmem>>, vector<1x1x32xf32>
    %96 = vector.shape_cast %95 : vector<1x1x32xf32> to vector<1x32xf32>
    %97 = vector.broadcast %96 : vector<1x32xf32> to vector<16x32xf32>
    %98 = arith.addf %94, %97 : vector<16x32xf32>
    %99 = arith.addf %82, %98 : vector<16x32xf32>
    %c0_54 = arith.constant 0 : index
    %c0_55 = arith.constant 0 : index
    %c0_56 = arith.constant 0 : index
    %100 = vector.load %arg13[%c0_54, %c0_55, %c0_56] : memref<2x1x32xf32, #tpu.memory_space<vmem>>, vector<1x1x32xf32>
    %101 = vector.shape_cast %100 : vector<1x1x32xf32> to vector<1x32xf32>
    %c0_57 = arith.constant 0 : index
    %c0_58 = arith.constant 0 : index
    %c0_59 = arith.constant 0 : index
    %102 = vector.load %arg14[%c0_57, %c0_58, %c0_59] : memref<2x1x32xf32, #tpu.memory_space<vmem>>, vector<1x1x32xf32>
    %103 = vector.shape_cast %102 : vector<1x1x32xf32> to vector<1x32xf32>
    %cst_60 = arith.constant dense<0.000000e+00> : vector<16xf32>
    %104 = vector.multi_reduction <add>, %99, %cst_60 [1] : vector<16x32xf32> to vector<16xf32>
    %105 = vector.shape_cast %104 : vector<16xf32> to vector<16x1xf32>
    %cst_61 = arith.constant 3.200000e+01 : f32
    %106 = vector.broadcast %cst_61 : f32 to vector<16x1xf32>
    %107 = arith.divf %105, %106 : vector<16x1xf32>
    %108 = vector.broadcast %107 : vector<16x1xf32> to vector<16x32xf32>
    %109 = arith.subf %99, %108 : vector<16x32xf32>
    %110 = arith.mulf %109, %109 : vector<16x32xf32>
    %cst_62 = arith.constant dense<0.000000e+00> : vector<16xf32>
    %111 = vector.multi_reduction <add>, %110, %cst_62 [1] : vector<16x32xf32> to vector<16xf32>
    %112 = vector.shape_cast %111 : vector<16xf32> to vector<16x1xf32>
    %cst_63 = arith.constant 3.200000e+01 : f32
    %113 = vector.broadcast %cst_63 : f32 to vector<16x1xf32>
    %114 = arith.divf %112, %113 : vector<16x1xf32>
    %cst_64 = arith.constant 9.99999974E-6 : f32
    %115 = vector.broadcast %cst_64 : f32 to vector<16x1xf32>
    %116 = arith.addf %114, %115 : vector<16x1xf32>
    %117 = math.rsqrt %116 : vector<16x1xf32>
    %118 = vector.broadcast %117 : vector<16x1xf32> to vector<16x32xf32>
    %119 = arith.mulf %109, %118 : vector<16x32xf32>
    %120 = vector.broadcast %101 : vector<1x32xf32> to vector<16x32xf32>
    %121 = arith.mulf %119, %120 : vector<16x32xf32>
    %122 = vector.broadcast %103 : vector<1x32xf32> to vector<16x32xf32>
    %123 = arith.addf %121, %122 : vector<16x32xf32>
    %c1 = arith.constant 1 : index
    %c0_65 = arith.constant 0 : index
    %c0_66 = arith.constant 0 : index
    %124 = vector.load %arg3[%c1, %c0_65, %c0_66] : memref<2x32x96xf32, #tpu.memory_space<vmem>>, vector<1x32x96xf32>
    %125 = vector.shape_cast %124 : vector<1x32x96xf32> to vector<32x96xf32>
    %cst_67 = arith.constant dense<0.000000e+00> : vector<16x96xf32>
    %126 = tpu.matmul %123, %125, %cst_67 {dimension_numbers = #tpu.dot_dimension_numbers<[1], [0], [0], [1], [0, 0, 1, 1], [], []>} : vector<16x32xf32>, vector<32x96xf32>, vector<16x96xf32> -> vector<16x96xf32>
    %c1_68 = arith.constant 1 : index
    %c0_69 = arith.constant 0 : index
    %c0_70 = arith.constant 0 : index
    %127 = vector.load %arg4[%c1_68, %c0_69, %c0_70] : memref<2x1x96xf32, #tpu.memory_space<vmem>>, vector<1x1x96xf32>
    %128 = vector.shape_cast %127 : vector<1x1x96xf32> to vector<1x96xf32>
    %129 = vector.broadcast %128 : vector<1x96xf32> to vector<16x96xf32>
    %130 = arith.addf %126, %129 : vector<16x96xf32>
    %c1_71 = arith.constant 1 : index
    %c0_72 = arith.constant 0 : index
    %c0_73 = arith.constant 0 : index
    %131 = vector.load %arg5[%c1_71, %c0_72, %c0_73] : memref<2x32x32xf32, #tpu.memory_space<vmem>>, vector<1x32x32xf32>
    %132 = vector.shape_cast %131 : vector<1x32x32xf32> to vector<32x32xf32>
    %cst_74 = arith.constant 0.000000e+00 : f32
    %133 = vector.broadcast %cst_74 : f32 to vector<16x32xf32>
    %134 = vector.extract_strided_slice %130 {offsets = [0, 0], sizes = [16, 16], strides = [1, 1]} : vector<16x96xf32> to vector<16x16xf32>
    %135 = vector.extract_strided_slice %130 {offsets = [0, 32], sizes = [16, 16], strides = [1, 1]} : vector<16x96xf32> to vector<16x16xf32>
    %136 = vector.extract_strided_slice %130 {offsets = [0, 64], sizes = [16, 16], strides = [1, 1]} : vector<16x96xf32> to vector<16x16xf32>
    %137 = tpu.transpose %135, [1, 0] : vector<16x16xf32> -> vector<16x16xf32>
    %cst_75 = arith.constant dense<0.000000e+00> : vector<16x16xf32>
    %138 = tpu.matmul %134, %137, %cst_75 {dimension_numbers = #tpu.dot_dimension_numbers<[1], [0], [0], [1], [0, 0, 1, 1], [], []>} : vector<16x16xf32>, vector<16x16xf32>, vector<16x16xf32> -> vector<16x16xf32>
    %139 = arith.addf %138, %3 : vector<16x16xf32>
    %cst_76 = arith.constant dense<0xFF800000> : vector<16xf32>
    %140 = vector.multi_reduction <maximumf>, %139, %cst_76 [1] : vector<16x16xf32> to vector<16xf32>
    %141 = vector.shape_cast %140 : vector<16xf32> to vector<16x1xf32>
    %142 = vector.broadcast %141 : vector<16x1xf32> to vector<16x16xf32>
    %143 = arith.subf %139, %142 : vector<16x16xf32>
    %144 = math.exp %143 : vector<16x16xf32>
    %cst_77 = arith.constant dense<0.000000e+00> : vector<16xf32>
    %145 = vector.multi_reduction <add>, %144, %cst_77 [1] : vector<16x16xf32> to vector<16xf32>
    %146 = vector.shape_cast %145 : vector<16xf32> to vector<16x1xf32>
    %147 = tpu.reciprocal %146 {approx = true} : vector<16x1xf32> -> vector<16x1xf32>
    %148 = vector.broadcast %147 : vector<16x1xf32> to vector<16x16xf32>
    %149 = arith.mulf %144, %148 : vector<16x16xf32>
    %cst_78 = arith.constant dense<0.000000e+00> : vector<16x16xf32>
    %150 = tpu.matmul %149, %136, %cst_78 {dimension_numbers = #tpu.dot_dimension_numbers<[1], [0], [0], [1], [0, 0, 1, 1], [], []>} : vector<16x16xf32>, vector<16x16xf32>, vector<16x16xf32> -> vector<16x16xf32>
    %151 = vector.extract_strided_slice %132 {offsets = [0, 0], sizes = [16, 32], strides = [1, 1]} : vector<32x32xf32> to vector<16x32xf32>
    %cst_79 = arith.constant dense<0.000000e+00> : vector<16x32xf32>
    %152 = tpu.matmul %150, %151, %cst_79 {dimension_numbers = #tpu.dot_dimension_numbers<[1], [0], [0], [1], [0, 0, 1, 1], [], []>} : vector<16x16xf32>, vector<16x32xf32>, vector<16x32xf32> -> vector<16x32xf32>
    %153 = arith.addf %133, %152 : vector<16x32xf32>
    %154 = vector.extract_strided_slice %130 {offsets = [0, 16], sizes = [16, 16], strides = [1, 1]} : vector<16x96xf32> to vector<16x16xf32>
    %155 = vector.extract_strided_slice %130 {offsets = [0, 48], sizes = [16, 16], strides = [1, 1]} : vector<16x96xf32> to vector<16x16xf32>
    %156 = vector.extract_strided_slice %130 {offsets = [0, 80], sizes = [16, 16], strides = [1, 1]} : vector<16x96xf32> to vector<16x16xf32>
    %157 = tpu.transpose %155, [1, 0] : vector<16x16xf32> -> vector<16x16xf32>
    %cst_80 = arith.constant dense<0.000000e+00> : vector<16x16xf32>
    %158 = tpu.matmul %154, %157, %cst_80 {dimension_numbers = #tpu.dot_dimension_numbers<[1], [0], [0], [1], [0, 0, 1, 1], [], []>} : vector<16x16xf32>, vector<16x16xf32>, vector<16x16xf32> -> vector<16x16xf32>
    %159 = arith.addf %158, %3 : vector<16x16xf32>
    %cst_81 = arith.constant dense<0xFF800000> : vector<16xf32>
    %160 = vector.multi_reduction <maximumf>, %159, %cst_81 [1] : vector<16x16xf32> to vector<16xf32>
    %161 = vector.shape_cast %160 : vector<16xf32> to vector<16x1xf32>
    %162 = vector.broadcast %161 : vector<16x1xf32> to vector<16x16xf32>
    %163 = arith.subf %159, %162 : vector<16x16xf32>
    %164 = math.exp %163 : vector<16x16xf32>
    %cst_82 = arith.constant dense<0.000000e+00> : vector<16xf32>
    %165 = vector.multi_reduction <add>, %164, %cst_82 [1] : vector<16x16xf32> to vector<16xf32>
    %166 = vector.shape_cast %165 : vector<16xf32> to vector<16x1xf32>
    %167 = tpu.reciprocal %166 {approx = true} : vector<16x1xf32> -> vector<16x1xf32>
    %168 = vector.broadcast %167 : vector<16x1xf32> to vector<16x16xf32>
    %169 = arith.mulf %164, %168 : vector<16x16xf32>
    %cst_83 = arith.constant dense<0.000000e+00> : vector<16x16xf32>
    %170 = tpu.matmul %169, %156, %cst_83 {dimension_numbers = #tpu.dot_dimension_numbers<[1], [0], [0], [1], [0, 0, 1, 1], [], []>} : vector<16x16xf32>, vector<16x16xf32>, vector<16x16xf32> -> vector<16x16xf32>
    %171 = vector.extract_strided_slice %132 {offsets = [16, 0], sizes = [16, 32], strides = [1, 1]} : vector<32x32xf32> to vector<16x32xf32>
    %cst_84 = arith.constant dense<0.000000e+00> : vector<16x32xf32>
    %172 = tpu.matmul %170, %171, %cst_84 {dimension_numbers = #tpu.dot_dimension_numbers<[1], [0], [0], [1], [0, 0, 1, 1], [], []>} : vector<16x16xf32>, vector<16x32xf32>, vector<16x32xf32> -> vector<16x32xf32>
    %173 = arith.addf %153, %172 : vector<16x32xf32>
    %c1_85 = arith.constant 1 : index
    %c0_86 = arith.constant 0 : index
    %c0_87 = arith.constant 0 : index
    %174 = vector.load %arg6[%c1_85, %c0_86, %c0_87] : memref<2x1x32xf32, #tpu.memory_space<vmem>>, vector<1x1x32xf32>
    %175 = vector.shape_cast %174 : vector<1x1x32xf32> to vector<1x32xf32>
    %176 = vector.broadcast %175 : vector<1x32xf32> to vector<16x32xf32>
    %177 = arith.addf %173, %176 : vector<16x32xf32>
    %178 = arith.addf %123, %177 : vector<16x32xf32>
    %c1_88 = arith.constant 1 : index
    %c0_89 = arith.constant 0 : index
    %c0_90 = arith.constant 0 : index
    %179 = vector.load %arg7[%c1_88, %c0_89, %c0_90] : memref<2x1x32xf32, #tpu.memory_space<vmem>>, vector<1x1x32xf32>
    %180 = vector.shape_cast %179 : vector<1x1x32xf32> to vector<1x32xf32>
    %c1_91 = arith.constant 1 : index
    %c0_92 = arith.constant 0 : index
    %c0_93 = arith.constant 0 : index
    %181 = vector.load %arg8[%c1_91, %c0_92, %c0_93] : memref<2x1x32xf32, #tpu.memory_space<vmem>>, vector<1x1x32xf32>
    %182 = vector.shape_cast %181 : vector<1x1x32xf32> to vector<1x32xf32>
    %cst_94 = arith.constant dense<0.000000e+00> : vector<16xf32>
    %183 = vector.multi_reduction <add>, %178, %cst_94 [1] : vector<16x32xf32> to vector<16xf32>
    %184 = vector.shape_cast %183 : vector<16xf32> to vector<16x1xf32>
    %cst_95 = arith.constant 3.200000e+01 : f32
    %185 = vector.broadcast %cst_95 : f32 to vector<16x1xf32>
    %186 = arith.divf %184, %185 : vector<16x1xf32>
    %187 = vector.broadcast %186 : vector<16x1xf32> to vector<16x32xf32>
    %188 = arith.subf %178, %187 : vector<16x32xf32>
    %189 = arith.mulf %188, %188 : vector<16x32xf32>
    %cst_96 = arith.constant dense<0.000000e+00> : vector<16xf32>
    %190 = vector.multi_reduction <add>, %189, %cst_96 [1] : vector<16x32xf32> to vector<16xf32>
    %191 = vector.shape_cast %190 : vector<16xf32> to vector<16x1xf32>
    %cst_97 = arith.constant 3.200000e+01 : f32
    %192 = vector.broadcast %cst_97 : f32 to vector<16x1xf32>
    %193 = arith.divf %191, %192 : vector<16x1xf32>
    %cst_98 = arith.constant 9.99999974E-6 : f32
    %194 = vector.broadcast %cst_98 : f32 to vector<16x1xf32>
    %195 = arith.addf %193, %194 : vector<16x1xf32>
    %196 = math.rsqrt %195 : vector<16x1xf32>
    %197 = vector.broadcast %196 : vector<16x1xf32> to vector<16x32xf32>
    %198 = arith.mulf %188, %197 : vector<16x32xf32>
    %199 = vector.broadcast %180 : vector<1x32xf32> to vector<16x32xf32>
    %200 = arith.mulf %198, %199 : vector<16x32xf32>
    %201 = vector.broadcast %182 : vector<1x32xf32> to vector<16x32xf32>
    %202 = arith.addf %200, %201 : vector<16x32xf32>
    %c1_99 = arith.constant 1 : index
    %c0_100 = arith.constant 0 : index
    %c0_101 = arith.constant 0 : index
    %203 = vector.load %arg9[%c1_99, %c0_100, %c0_101] : memref<2x32x128xf32, #tpu.memory_space<vmem>>, vector<1x32x128xf32>
    %204 = vector.shape_cast %203 : vector<1x32x128xf32> to vector<32x128xf32>
    %cst_102 = arith.constant dense<0.000000e+00> : vector<16x128xf32>
    %205 = tpu.matmul %202, %204, %cst_102 {dimension_numbers = #tpu.dot_dimension_numbers<[1], [0], [0], [1], [0, 0, 1, 1], [], []>} : vector<16x32xf32>, vector<32x128xf32>, vector<16x128xf32> -> vector<16x128xf32>
    %c1_103 = arith.constant 1 : index
    %c0_104 = arith.constant 0 : index
    %c0_105 = arith.constant 0 : index
    %206 = vector.load %arg10[%c1_103, %c0_104, %c0_105] : memref<2x1x128xf32, #tpu.memory_space<vmem>>, vector<1x1x128xf32>
    %207 = vector.shape_cast %206 : vector<1x1x128xf32> to vector<1x128xf32>
    %208 = vector.broadcast %207 : vector<1x128xf32> to vector<16x128xf32>
    %209 = arith.addf %205, %208 : vector<16x128xf32>
    %cst_106 = arith.constant 0.000000e+00 : f32
    %210 = vector.broadcast %cst_106 : f32 to vector<16x128xf32>
    %211 = arith.maximumf %209, %210 : vector<16x128xf32>
    %c1_107 = arith.constant 1 : index
    %c0_108 = arith.constant 0 : index
    %c0_109 = arith.constant 0 : index
    %212 = vector.load %arg11[%c1_107, %c0_108, %c0_109] : memref<2x128x32xf32, #tpu.memory_space<vmem>>, vector<1x128x32xf32>
    %213 = vector.shape_cast %212 : vector<1x128x32xf32> to vector<128x32xf32>
    %cst_110 = arith.constant dense<0.000000e+00> : vector<16x32xf32>
    %214 = tpu.matmul %211, %213, %cst_110 {dimension_numbers = #tpu.dot_dimension_numbers<[1], [0], [0], [1], [0, 0, 1, 1], [], []>} : vector<16x128xf32>, vector<128x32xf32>, vector<16x32xf32> -> vector<16x32xf32>
    %c1_111 = arith.constant 1 : index
    %c0_112 = arith.constant 0 : index
    %c0_113 = arith.constant 0 : index
    %215 = vector.load %arg12[%c1_111, %c0_112, %c0_113] : memref<2x1x32xf32, #tpu.memory_space<vmem>>, vector<1x1x32xf32>
    %216 = vector.shape_cast %215 : vector<1x1x32xf32> to vector<1x32xf32>
    %217 = vector.broadcast %216 : vector<1x32xf32> to vector<16x32xf32>
    %218 = arith.addf %214, %217 : vector<16x32xf32>
    %219 = arith.addf %202, %218 : vector<16x32xf32>
    %c1_114 = arith.constant 1 : index
    %c0_115 = arith.constant 0 : index
    %c0_116 = arith.constant 0 : index
    %220 = vector.load %arg13[%c1_114, %c0_115, %c0_116] : memref<2x1x32xf32, #tpu.memory_space<vmem>>, vector<1x1x32xf32>
    %221 = vector.shape_cast %220 : vector<1x1x32xf32> to vector<1x32xf32>
    %c1_117 = arith.constant 1 : index
    %c0_118 = arith.constant 0 : index
    %c0_119 = arith.constant 0 : index
    %222 = vector.load %arg14[%c1_117, %c0_118, %c0_119] : memref<2x1x32xf32, #tpu.memory_space<vmem>>, vector<1x1x32xf32>
    %223 = vector.shape_cast %222 : vector<1x1x32xf32> to vector<1x32xf32>
    %cst_120 = arith.constant dense<0.000000e+00> : vector<16xf32>
    %224 = vector.multi_reduction <add>, %219, %cst_120 [1] : vector<16x32xf32> to vector<16xf32>
    %225 = vector.shape_cast %224 : vector<16xf32> to vector<16x1xf32>
    %cst_121 = arith.constant 3.200000e+01 : f32
    %226 = vector.broadcast %cst_121 : f32 to vector<16x1xf32>
    %227 = arith.divf %225, %226 : vector<16x1xf32>
    %228 = vector.broadcast %227 : vector<16x1xf32> to vector<16x32xf32>
    %229 = arith.subf %219, %228 : vector<16x32xf32>
    %230 = arith.mulf %229, %229 : vector<16x32xf32>
    %cst_122 = arith.constant dense<0.000000e+00> : vector<16xf32>
    %231 = vector.multi_reduction <add>, %230, %cst_122 [1] : vector<16x32xf32> to vector<16xf32>
    %232 = vector.shape_cast %231 : vector<16xf32> to vector<16x1xf32>
    %cst_123 = arith.constant 3.200000e+01 : f32
    %233 = vector.broadcast %cst_123 : f32 to vector<16x1xf32>
    %234 = arith.divf %232, %233 : vector<16x1xf32>
    %cst_124 = arith.constant 9.99999974E-6 : f32
    %235 = vector.broadcast %cst_124 : f32 to vector<16x1xf32>
    %236 = arith.addf %234, %235 : vector<16x1xf32>
    %237 = math.rsqrt %236 : vector<16x1xf32>
    %238 = vector.broadcast %237 : vector<16x1xf32> to vector<16x32xf32>
    %239 = arith.mulf %229, %238 : vector<16x32xf32>
    %240 = vector.broadcast %221 : vector<1x32xf32> to vector<16x32xf32>
    %241 = arith.mulf %239, %240 : vector<16x32xf32>
    %242 = vector.broadcast %223 : vector<1x32xf32> to vector<16x32xf32>
    %243 = arith.addf %241, %242 : vector<16x32xf32>
    %c0_125 = arith.constant 0 : index
    %c0_126 = arith.constant 0 : index
    %244 = vector.load %arg15[%c0_125, %c0_126] : memref<1x32xf32, #tpu.memory_space<vmem>>, vector<1x32xf32>
    %c0_127 = arith.constant 0 : index
    %c0_128 = arith.constant 0 : index
    %245 = vector.load %arg16[%c0_127, %c0_128] : memref<1x32xf32, #tpu.memory_space<vmem>>, vector<1x32xf32>
    %cst_129 = arith.constant dense<0.000000e+00> : vector<16xf32>
    %246 = vector.multi_reduction <add>, %243, %cst_129 [1] : vector<16x32xf32> to vector<16xf32>
    %247 = vector.shape_cast %246 : vector<16xf32> to vector<16x1xf32>
    %cst_130 = arith.constant 3.200000e+01 : f32
    %248 = vector.broadcast %cst_130 : f32 to vector<16x1xf32>
    %249 = arith.divf %247, %248 : vector<16x1xf32>
    %250 = vector.broadcast %249 : vector<16x1xf32> to vector<16x32xf32>
    %251 = arith.subf %243, %250 : vector<16x32xf32>
    %252 = arith.mulf %251, %251 : vector<16x32xf32>
    %cst_131 = arith.constant dense<0.000000e+00> : vector<16xf32>
    %253 = vector.multi_reduction <add>, %252, %cst_131 [1] : vector<16x32xf32> to vector<16xf32>
    %254 = vector.shape_cast %253 : vector<16xf32> to vector<16x1xf32>
    %cst_132 = arith.constant 3.200000e+01 : f32
    %255 = vector.broadcast %cst_132 : f32 to vector<16x1xf32>
    %256 = arith.divf %254, %255 : vector<16x1xf32>
    %cst_133 = arith.constant 9.99999974E-6 : f32
    %257 = vector.broadcast %cst_133 : f32 to vector<16x1xf32>
    %258 = arith.addf %256, %257 : vector<16x1xf32>
    %259 = math.rsqrt %258 : vector<16x1xf32>
    %260 = vector.broadcast %259 : vector<16x1xf32> to vector<16x32xf32>
    %261 = arith.mulf %251, %260 : vector<16x32xf32>
    %262 = vector.broadcast %244 : vector<1x32xf32> to vector<16x32xf32>
    %263 = arith.mulf %261, %262 : vector<16x32xf32>
    %264 = vector.broadcast %245 : vector<1x32xf32> to vector<16x32xf32>
    %265 = arith.addf %263, %264 : vector<16x32xf32>
    %c0_134 = arith.constant 0 : index
    %c0_135 = arith.constant 0 : index
    %266 = vector.load %arg17[%c0_134, %c0_135] : memref<32x64xf32, #tpu.memory_space<vmem>>, vector<32x64xf32>
    %cst_136 = arith.constant dense<0.000000e+00> : vector<16x64xf32>
    %267 = tpu.matmul %265, %266, %cst_136 {dimension_numbers = #tpu.dot_dimension_numbers<[1], [0], [0], [1], [0, 0, 1, 1], [], []>} : vector<16x32xf32>, vector<32x64xf32>, vector<16x64xf32> -> vector<16x64xf32>
    %c0_137 = arith.constant 0 : index
    %c0_138 = arith.constant 0 : index
    %268 = vector.load %arg18[%c0_137, %c0_138] : memref<1x64xf32, #tpu.memory_space<vmem>>, vector<1x64xf32>
    %269 = vector.broadcast %268 : vector<1x64xf32> to vector<16x64xf32>
    %270 = arith.addf %267, %269 : vector<16x64xf32>
    %c0_139 = arith.constant 0 : index
    %c0_140 = arith.constant 0 : index
    %271 = vector.load %arg19[%c0_139, %c0_140] : memref<16x64xf32, #tpu.memory_space<vmem>>, vector<16x64xf32>
    tpu.vector_store %arg19[%c0_139, %c0_140], %270 {strides = array<i32>} : memref<16x64xf32, #tpu.memory_space<vmem>>, vector<16x64xf32>,
    return
  }
}

</mosaic_0001>

<llo_original>
// kernel: tpu_custom_call.1
$region0: #{tpu_custom_call.1}
  #allocation0 [shape = 'u32[]', space=smem, size = 0x4, offset = 0x4, fixed_abs, tag = 'smem constant byte address 0x4 - core index']
  #allocation1 [shape = 'u32[144,128]{1,0:T(1,128)}', space=vmem, size = 0x12000, scoped, tag = 'internal scratch']
  %s0 = inlined_call_operand.vmem [shape: f32[16,32], index: 0, kind: input, shape index: {}]
  %s1 = inlined_call_operand.vmem [shape: f32[16,32], index: 1, kind: input, shape index: {}]
  %s2 = inlined_call_operand.vmem [shape: f32[16,16], index: 2, kind: input, shape index: {}]
  %s3 = inlined_call_operand.vmem [shape: f32[2,32,96], index: 3, kind: input, shape index: {}]
  %s4 = inlined_call_operand.vmem [shape: f32[2,1,96], index: 4, kind: input, shape index: {}]
  %s5 = inlined_call_operand.vmem [shape: f32[2,32,32], index: 5, kind: input, shape index: {}]
  %s6 = inlined_call_operand.vmem [shape: f32[2,1,32], index: 6, kind: input, shape index: {}]
  %s7 = inlined_call_operand.vmem [shape: f32[2,1,32], index: 7, kind: input, shape index: {}]
  %s8 = inlined_call_operand.vmem [shape: f32[2,1,32], index: 8, kind: input, shape index: {}]
  %s9 = inlined_call_operand.vmem [shape: f32[2,32,128], index: 9, kind: input, shape index: {}]
  %s10 = inlined_call_operand.vmem [shape: f32[2,1,128], index: 10, kind: input, shape index: {}]
  %s11 = inlined_call_operand.vmem [shape: f32[2,128,32], index: 11, kind: input, shape index: {}]
  %s12 = inlined_call_operand.vmem [shape: f32[2,1,32], index: 12, kind: input, shape index: {}]
  %s13 = inlined_call_operand.vmem [shape: f32[2,1,32], index: 13, kind: input, shape index: {}]
  %s14 = inlined_call_operand.vmem [shape: f32[2,1,32], index: 14, kind: input, shape index: {}]
  %s15 = inlined_call_operand.vmem [shape: f32[1,32], index: 15, kind: input, shape index: {}]
  %s16 = inlined_call_operand.vmem [shape: f32[1,32], index: 16, kind: input, shape index: {}]
  %s17 = inlined_call_operand.vmem [shape: f32[32,64], index: 17, kind: input, shape index: {}]
  %s18 = inlined_call_operand.vmem [shape: f32[1,64], index: 18, kind: input, shape index: {}]
  %s19 = inlined_call_operand.hbm [shape: f32[16,64], index: 19, kind: output, shape index: {}]
  %s20 = sld [smem:[#allocation0]]
  $region86: #{tpu_custom_call.1} parent=0
    _
  %s22 = ssub.s32 1, %s20
  %s23 = scalar_select 0, %s22, %s20
  $region1: #{tpu_custom_call.1} parent=0
    #allocation2 [shape = 'u8[8192]{0}', space=vmem, size = 0x2000, scoped, tag = 'output window, operand 0, single buffered']
    #allocation3 [shape = 's32[1]{0}', space=sflag, size = 0x4, scoped, tag = 'scoped memory for tpu_custom_call.1']
    %24 = vsyncpa [#allocation3], 0
    // Predicated region
    $region2: #{tpu_custom_call.1} parent=1 // pred_check
      _
    $region3: #{tpu_custom_call.1} parent=1 // pred_check_branch
      %26 = sbr.rel (0) target = $region5
    $region4: #{tpu_custom_call.1} parent=1 // pred_region
      _
    $region5: #{tpu_custom_call.1} parent=1 // pred_fallthru
      _
    // Predicated region
    $region6: #{tpu_custom_call.1} parent=1 // pred_check
      _
    $region7: #{tpu_custom_call.1} parent=1 // pred_check_branch
      %28 = sbr.rel (0) target = $region9
    $region8: #{tpu_custom_call.1} parent=1 // pred_region
      _
    $region9: #{tpu_custom_call.1} parent=1 // pred_fallthru
      _
    // Predicated region
    $region10: #{tpu_custom_call.1} parent=1 // pred_check
      _
    $region11: #{tpu_custom_call.1} parent=1 // pred_check_branch
      %30 = sbr.rel (0) target = $region13
    $region12: #{tpu_custom_call.1} parent=1 // pred_region
      _
    $region13: #{tpu_custom_call.1} parent=1 // pred_fallthru
      _
    // Predicated region
    $region14: #{tpu_custom_call.1} parent=1 // pred_check
      _
    $region15: #{tpu_custom_call.1} parent=1 // pred_check_branch
      %32 = sbr.rel (0) target = $region17
    $region16: #{tpu_custom_call.1} parent=1 // pred_region
      _
    $region17: #{tpu_custom_call.1} parent=1 // pred_fallthru
      _
    // Predicated region
    $region18: #{tpu_custom_call.1} parent=1 // pred_check
      _
    $region19: #{tpu_custom_call.1} parent=1 // pred_check_branch
      %34 = sbr.rel (0) target = $region21
    $region20: #{tpu_custom_call.1} parent=1 // pred_region
      _
    $region21: #{tpu_custom_call.1} parent=1 // pred_fallthru
      _
    // Predicated region
    $region22: #{tpu_custom_call.1} parent=1 // pred_check
      _
    $region23: #{tpu_custom_call.1} parent=1 // pred_check_branch
      %36 = sbr.rel (0) target = $region25
    $region24: #{tpu_custom_call.1} parent=1 // pred_region
      _
    $region25: #{tpu_custom_call.1} parent=1 // pred_fallthru
      _
    // Predicated region
    $region26: #{tpu_custom_call.1} parent=1 // pred_check
      _
    $region27: #{tpu_custom_call.1} parent=1 // pred_check_branch
      %38 = sbr.rel (0) target = $region29
    $region28: #{tpu_custom_call.1} parent=1 // pred_region
      _
    $region29: #{tpu_custom_call.1} parent=1 // pred_fallthru
      _
    // Predicated region
    $region30: #{tpu_custom_call.1} parent=1 // pred_check
      _
    $region31: #{tpu_custom_call.1} parent=1 // pred_check_branch
      %40 = sbr.rel (0) target = $region33
    $region32: #{tpu_custom_call.1} parent=1 // pred_region
      _
    $region33: #{tpu_custom_call.1} parent=1 // pred_fallthru
      _
    // Predicated region
    $region34: #{tpu_custom_call.1} parent=1 // pred_check
      _
    $region35: #{tpu_custom_call.1} parent=1 // pred_check_branch
      %42 = sbr.rel (0) target = $region37
    $region36: #{tpu_custom_call.1} parent=1 // pred_region
      _
    $region37: #{tpu_custom_call.1} parent=1 // pred_fallthru
      _
    // Predicated region
    $region38: #{tpu_custom_call.1} parent=1 // pred_check
      _
    $region39: #{tpu_custom_call.1} parent=1 // pred_check_branch
      %44 = sbr.rel (0) target = $region41
    $region40: #{tpu_custom_call.1} parent=1 // pred_region
      _
    $region41: #{tpu_custom_call.1} parent=1 // pred_fallthru
      _
    // Predicated region
    $region42: #{tpu_custom_call.1} parent=1 // pred_check
      _
    $region43: #{tpu_custom_call.1} parent=1 // pred_check_branch
      %46 = sbr.rel (0) target = $region45
    $region44: #{tpu_custom_call.1} parent=1 // pred_region
      _
    $region45: #{tpu_custom_call.1} parent=1 // pred_fallthru
      _
    // Predicated region
    $region46: #{tpu_custom_call.1} parent=1 // pred_check
      _
    $region47: #{tpu_custom_call.1} parent=1 // pred_check_branch
      %48 = sbr.rel (0) target = $region49
    $region48: #{tpu_custom_call.1} parent=1 // pred_region
      _
    $region49: #{tpu_custom_call.1} parent=1 // pred_fallthru
      _
    // Predicated region
    $region50: #{tpu_custom_call.1} parent=1 // pred_check
      _
    $region51: #{tpu_custom_call.1} parent=1 // pred_check_branch
      %50 = sbr.rel (0) target = $region53
    $region52: #{tpu_custom_call.1} parent=1 // pred_region
      _
    $region53: #{tpu_custom_call.1} parent=1 // pred_fallthru
      _
    // Predicated region
    $region54: #{tpu_custom_call.1} parent=1 // pred_check
      _
    $region55: #{tpu_custom_call.1} parent=1 // pred_check_branch
      %52 = sbr.rel (0) target = $region57
    $region56: #{tpu_custom_call.1} parent=1 // pred_region
      _
    $region57: #{tpu_custom_call.1} parent=1 // pred_fallthru
      _
    // Predicated region
    $region58: #{tpu_custom_call.1} parent=1 // pred_check
      _
    $region59: #{tpu_custom_call.1} parent=1 // pred_check_branch
      %54 = sbr.rel (0) target = $region61
    $region60: #{tpu_custom_call.1} parent=1 // pred_region
      _
    $region61: #{tpu_custom_call.1} parent=1 // pred_fallthru
      _
    // Predicated region
    $region62: #{tpu_custom_call.1} parent=1 // pred_check
      _
    $region63: #{tpu_custom_call.1} parent=1 // pred_check_branch
      %56 = sbr.rel (0) target = $region65
    $region64: #{tpu_custom_call.1} parent=1 // pred_region
      _
    $region65: #{tpu_custom_call.1} parent=1 // pred_fallthru
      _
    // Predicated region
    $region66: #{tpu_custom_call.1} parent=1 // pred_check
      _
    $region67: #{tpu_custom_call.1} parent=1 // pred_check_branch
      %58 = sbr.rel (0) target = $region69
    $region68: #{tpu_custom_call.1} parent=1 // pred_region
      _
    $region69: #{tpu_custom_call.1} parent=1 // pred_fallthru
      _
    // Predicated region
    $region70: #{tpu_custom_call.1} parent=1 // pred_check
      _
    $region71: #{tpu_custom_call.1} parent=1 // pred_check_branch
      %60 = sbr.rel (0) target = $region73
    $region72: #{tpu_custom_call.1} parent=1 // pred_region
      _
    $region73: #{tpu_custom_call.1} parent=1 // pred_fallthru
      _
    // Predicated region
    $region74: #{tpu_custom_call.1} parent=1 // pred_check
      _
    $region75: #{tpu_custom_call.1} parent=1 // pred_check_branch
      %62 = sbr.rel (0) target = $region77
    $region76: #{tpu_custom_call.1} parent=1 // pred_region
      _
    $region77: #{tpu_custom_call.1} parent=1 // pred_fallthru
      _
    %v63 = vld [vmem:[%s0] sm:$0xff]
    %v64 = vld [vmem:[%s0 + $0x8] sm:$0xff]
    %v65 = vld [vmem:[%s1] sm:$0xff]
    %v66 = vld [vmem:[%s1 + $0x8] sm:$0xff]
    %v67 = vadd.f32 %v63, %v65
    %v68 = vadd.f32 %v64, %v66
    %v69 = vld [vmem:[%s2] sm:$0xff]
    %v70 = vld [vmem:[%s2 + $0x8] sm:$0xff]
    %v71 = vld [vmem:[%s3] sm:$0xff]
    %v72 = vld [vmem:[%s3 + $0x8] sm:$0xff]
    %v73 = vld [vmem:[%s3 + $0x10] sm:$0xff]
    %v74 = vld [vmem:[%s3 + $0x18] sm:$0xff]
    %v75 = vld [vmem:[%s4] sm:$0x1]
    %v77 = vlaneseq
    %v78 = vshrl.u32 %v77, 7
    %v79 = vsub.s32 0, %v78
    %v80 = vrot.slane %v75, %v79
    %vm82 = vcmask 261120
    %v84 = vsel %vm82, %v67, 0
    %v87 = vsel %vm82, %v68, 0
    %89 = vmatprep.subr.mxu0 0.0
    %90 = vmatpush1.msra.mxu0 %v71
    %91 = vmatprep.subr.mxu0 0.0
    %92 = vmatpush1.msra.mxu0 %v72
    %93 = vmatprep.subr.mxu0 0.0
    %94 = vmatpush1.msra.mxu0 %v73
    %95 = vmatprep.subr.mxu0 0.0
    %96 = vmatpush1.msra.mxu0 %v74
    %97 = vmatprep.subr.mxu0 0.0
    %98 = vmatpush1.msra.mxu0 0.0
    %99 = vmatprep.subr.mxu0 0.0
    %100 = vmatpush1.msra.mxu0 0.0
    %101 = vmatprep.subr.mxu0 0.0
    %102 = vmatpush1.msra.mxu0 0.0
    %103 = vmatprep.subr.mxu0 0.0
    %104 = vmatpush1.msra.mxu0 0.0
    %105 = vmatprep.subr.mxu0 0.0
    %106 = vmatpush1.msra.mxu0 0.0
    %107 = vmatprep.subr.mxu0 0.0
    %108 = vmatpush1.msra.mxu0 0.0
    %109 = vmatprep.subr.mxu0 0.0
    %110 = vmatpush1.msra.mxu0 0.0
    %111 = vmatprep.subr.mxu0 0.0
    %112 = vmatpush1.msra.mxu0 0.0
    %113 = vmatprep.subr.mxu0 0.0
    %114 = vmatpush1.msra.mxu0 0.0
    %115 = vmatprep.subr.mxu0 0.0
    %116 = vmatpush1.msra.mxu0 0.0
    %117 = vmatprep.subr.mxu0 0.0
    %118 = vmatpush1.msra.mxu0 0.0
    %119 = vmatprep.subr.mxu0 0.0
    %120 = vmatpush1.msra.mxu0 0.0
    %121 = vmatprep.subr.mxu0 0.0
    %122 = vmatpush1.msra.mxu0 0.0
    %123 = vmatprep.subr.mxu0 0.0
    %124 = vmatpush1.msra.mxu0 0.0
    %125 = vmatprep.subr.mxu0 0.0
    %126 = vmatpush1.msra.mxu0 0.0
    %127 = vmatprep.subr.mxu0 0.0
    %128 = vmatpush1.msra.mxu0 0.0
    %129 = vmatprep.subr.mxu0 0.0
    %130 = vmatpush1.msra.mxu0 0.0
    %131 = vmatprep.subr.mxu0 0.0
    %132 = vmatpush1.msra.mxu0 0.0
    %133 = vmatprep.subr.mxu0 0.0
    %134 = vmatpush1.msra.mxu0 0.0
    %135 = vmatprep.subr.mxu0 0.0
    %136 = vmatpush1.msra.mxu0 0.0
    %137 = vmatprep.subr.mxu0 0.0
    %138 = vmatpush1.msra.mxu0 0.0
    %139 = vmatprep.subr.mxu0 0.0
    %140 = vmatpush1.msra.mxu0 0.0
    %141 = vmatprep.subr.mxu0 0.0
    %142 = vmatpush1.msra.mxu0 0.0
    %143 = vmatprep.subr.mxu0 0.0
    %144 = vmatpush1.msra.mxu0 0.0
    %145 = vmatprep.subr.mxu0 0.0
    %146 = vmatpush1.msra.mxu0 0.0
    %147 = vmatprep.subr.mxu0 0.0
    %148 = vmatpush1.msra.mxu0 0.0
    %149 = vmatprep.subr.mxu0 0.0
    %150 = vmatpush1.msra.mxu0 0.0
    %151 = vmatprep.subr.mxu0 0.0
    %152 = vmatpush1.msra.mxu0 0.0
    %153 = vmatprep.mubr.f32.mxu0 0.0
    %154 = vmatmul.mubr.f32.gmra.mrb[0].mxu0 %v84
    %v155 = vpop.f32.mrb[0].mxu0
    %v156 = vadd.f32 %v80, %v155
    %v157 = vpop.f32.mrb[0].mxu0
    %158 = vmatprep.mubr.f32.mxu0 0.0
    %159 = vmatmul.mubr.f32.gmra.mrb[0].mxu0 %v87
    %v160 = vpop.f32.mrb[0].mxu0
    %v161 = vadd.f32 %v80, %v160
    %v162 = vpop.f32.mrb[0].mxu0
    %163 = vdwg.mxu0
    %v164 = vld [vmem:[%s5] sm:$0xff]
    %v165 = vld [vmem:[%s5 + $0x8] sm:$0xff]
    %v166 = vld [vmem:[%s5 + $0x10] sm:$0xff]
    %v167 = vld [vmem:[%s5 + $0x18] sm:$0xff]
    %170 = vrot.lane.b32.xlu0 %v156, 96
    %v171 = vpop.permute.xlu0 %170
    %172 = vrot.lane.b32.xlu0 %v161, 96
    %v173 = vpop.permute.xlu0 %172
    %vm174 = vcmask 130048
    %v175 = vsel %vm174, %v156, 0
    %v177 = vsel %vm174, %v161, 0
    %v179 = vsel %vm174, %v171, 0
    %v181 = vsel %vm174, %v173, 0
    %183 = vmatprep.subr.mxu0 0.0
    %184 = vmatpush1.xpose.msra.mxu0 %v179
    %185 = vmatprep.subr.mxu0 0.0
    %186 = vmatpush1.xpose.msra.mxu0 %v181
    %187 = vmatprep.subr.mxu0 0.0
    %188 = vmatpush1.xpose.msra.mxu0 0.0
    %189 = vmatprep.subr.mxu0 0.0
    %190 = vmatpush1.xpose.msra.mxu0 0.0
    %191 = vmatprep.subr.mxu0 0.0
    %192 = vmatpush1.xpose.msra.mxu0 0.0
    %193 = vmatprep.subr.mxu0 0.0
    %194 = vmatpush1.xpose.msra.mxu0 0.0
    %195 = vmatprep.subr.mxu0 0.0
    %196 = vmatpush1.xpose.msra.mxu0 0.0
    %197 = vmatprep.subr.mxu0 0.0
    %198 = vmatpush1.xpose.msra.mxu0 0.0
    %199 = vmatprep.subr.mxu0 0.0
    %200 = vmatpush1.xpose.msra.mxu0 0.0
    %201 = vmatprep.subr.mxu0 0.0
    %202 = vmatpush1.xpose.msra.mxu0 0.0
    %203 = vmatprep.subr.mxu0 0.0
    %204 = vmatpush1.xpose.msra.mxu0 0.0
    %205 = vmatprep.subr.mxu0 0.0
    %206 = vmatpush1.xpose.msra.mxu0 0.0
    %207 = vmatprep.subr.mxu0 0.0
    %208 = vmatpush1.xpose.msra.mxu0 0.0
    %209 = vmatprep.subr.mxu0 0.0
    %210 = vmatpush1.xpose.msra.mxu0 0.0
    %211 = vmatprep.subr.mxu0 0.0
    %212 = vmatpush1.xpose.msra.mxu0 0.0
    %213 = vmatprep.subr.mxu0 0.0
    %214 = vmatpush1.xpose.msra.mxu0 0.0
    %215 = vmatprep.subr.mxu0 0.0
    %216 = vmatpush1.xpose.msra.mxu0 0.0
    %217 = vmatprep.subr.mxu0 0.0
    %218 = vmatpush1.xpose.msra.mxu0 0.0
    %219 = vmatprep.subr.mxu0 0.0
    %220 = vmatpush1.xpose.msra.mxu0 0.0
    %221 = vmatprep.subr.mxu0 0.0
    %222 = vmatpush1.xpose.msra.mxu0 0.0
    %223 = vmatprep.subr.mxu0 0.0
    %224 = vmatpush1.xpose.msra.mxu0 0.0
    %225 = vmatprep.subr.mxu0 0.0
    %226 = vmatpush1.xpose.msra.mxu0 0.0
    %227 = vmatprep.subr.mxu0 0.0
    %228 = vmatpush1.xpose.msra.mxu0 0.0
    %229 = vmatprep.subr.mxu0 0.0
    %230 = vmatpush1.xpose.msra.mxu0 0.0
    %231 = vmatprep.subr.mxu0 0.0
    %232 = vmatpush1.xpose.msra.mxu0 0.0
    %233 = vmatprep.subr.mxu0 0.0
    %234 = vmatpush1.xpose.msra.mxu0 0.0
    %235 = vmatprep.subr.mxu0 0.0
    %236 = vmatpush1.xpose.msra.mxu0 0.0
    %237 = vmatprep.subr.mxu0 0.0
    %238 = vmatpush1.xpose.msra.mxu0 0.0
    %239 = vmatprep.subr.mxu0 0.0
    %240 = vmatpush1.xpose.msra.mxu0 0.0
    %241 = vmatprep.subr.mxu0 0.0
    %242 = vmatpush1.xpose.msra.mxu0 0.0
    %243 = vmatprep.subr.mxu0 0.0
    %244 = vmatpush1.xpose.msra.mxu0 0.0
    %245 = vmatprep.subr.mxu0 0.0
    %246 = vmatpush1.xpose.msra.mxu0 0.0
    %247 = vmatprep.mubr.f32.mxu0 0.0
    %248 = vmatmul.mubr.f32.gmra.mrb[0].mxu0 %v175
    %v249 = vpop.f32.mrb[0].mxu0
    %v250 = vadd.f32 %v69, %v249
    %v251 = vpop.f32.mrb[0].mxu0
    %252 = vmatprep.mubr.f32.mxu0 0.0
    %253 = vmatmul.mubr.f32.gmra.mrb[0].mxu0 %v177
    %v254 = vpop.f32.mrb[0].mxu0
    %v255 = vadd.f32 %v70, %v254
    %v256 = vpop.f32.mrb[0].mxu0
    %257 = vdwg.mxu0
    %v258 = vsel %vm174, %v250, -inf
    %259 = vmax.xlane.f32.xlu0 %v258
    %v260 = vpop.xlane.xlu0 %259
    %v261 = vsel %vm174, %v255, -inf
    %262 = vmax.xlane.f32.xlu0 %v261
    %v263 = vpop.xlane.xlu0 %262
    %v264 = vsub.f32 %v250, %v260
    %v265 = vsub.f32 %v255, %v263
    %v266 = vmul.f32 %v264, 1.442695
    %v267 = vpow.pop %v266
    %v268 = vmul.f32 %v265, 1.442695
    %v269 = vpow.pop %v268
    %v270 = vsel %vm174, %v267, 0.0
    %271 = vadd.xlane.f32.xlu0 %v270
    %v272 = vpop.xlane.xlu0 %271
    %v273 = vsel %vm174, %v269, 0.0
    %274 = vadd.xlane.f32.xlu0 %v273
    %v275 = vpop.xlane.xlu0 %274
    %v276 = vrcp.pop %v272
    %v277 = vrcp.pop %v275
    %v278 = vmul.f32 %v267, %v276
    %v279 = vmul.f32 %v269, %v277
    %280 = vrot.lane.b32.xlu0 %v156, 64
    %v281 = vpop.permute.xlu0 %280
    %282 = vrot.lane.b32.xlu0 %v161, 64
    %v283 = vpop.permute.xlu0 %282
    %v287 = vsel %vm174, %v278, 0
    %v290 = vsel %vm174, %v279, 0
    %292 = vmatprep.subr.mxu0 0.0
    %293 = vmatpush1.msra.mxu0 %v281
    %294 = vmatprep.subr.mxu0 0.0
    %295 = vmatpush1.msra.mxu0 %v283
    %296 = vmatprep.subr.mxu0 0.0
    %297 = vmatpush1.msra.mxu0 0.0
    %298 = vmatprep.subr.mxu0 0.0
    %299 = vmatpush1.msra.mxu0 0.0
    %300 = vmatprep.subr.mxu0 0.0
    %301 = vmatpush1.msra.mxu0 0.0
    %302 = vmatprep.subr.mxu0 0.0
    %303 = vmatpush1.msra.mxu0 0.0
    %304 = vmatprep.subr.mxu0 0.0
    %305 = vmatpush1.msra.mxu0 0.0
    %306 = vmatprep.subr.mxu0 0.0
    %307 = vmatpush1.msra.mxu0 0.0
    %308 = vmatprep.subr.mxu0 0.0
    %309 = vmatpush1.msra.mxu0 0.0
    %310 = vmatprep.subr.mxu0 0.0
    %311 = vmatpush1.msra.mxu0 0.0
    %312 = vmatprep.subr.mxu0 0.0
    %313 = vmatpush1.msra.mxu0 0.0
    %314 = vmatprep.subr.mxu0 0.0
    %315 = vmatpush1.msra.mxu0 0.0
    %316 = vmatprep.subr.mxu0 0.0
    %317 = vmatpush1.msra.mxu0 0.0
    %318 = vmatprep.subr.mxu0 0.0
    %319 = vmatpush1.msra.mxu0 0.0
    %320 = vmatprep.subr.mxu0 0.0
    %321 = vmatpush1.msra.mxu0 0.0
    %322 = vmatprep.subr.mxu0 0.0
    %323 = vmatpush1.msra.mxu0 0.0
    %324 = vmatprep.subr.mxu0 0.0
    %325 = vmatpush1.msra.mxu0 0.0
    %326 = vmatprep.subr.mxu0 0.0
    %327 = vmatpush1.msra.mxu0 0.0
    %328 = vmatprep.subr.mxu0 0.0
    %329 = vmatpush1.msra.mxu0 0.0
    %330 = vmatprep.subr.mxu0 0.0
    %331 = vmatpush1.msra.mxu0 0.0
    %332 = vmatprep.subr.mxu0 0.0
    %333 = vmatpush1.msra.mxu0 0.0
    %334 = vmatprep.subr.mxu0 0.0
    %335 = vmatpush1.msra.mxu0 0.0
    %336 = vmatprep.subr.mxu0 0.0
    %337 = vmatpush1.msra.mxu0 0.0
    %338 = vmatprep.subr.mxu0 0.0
    %339 = vmatpush1.msra.mxu0 0.0
    %340 = vmatprep.subr.mxu0 0.0
    %341 = vmatpush1.msra.mxu0 0.0
    %342 = vmatprep.subr.mxu0 0.0
    %343 = vmatpush1.msra.mxu0 0.0
    %344 = vmatprep.subr.mxu0 0.0
    %345 = vmatpush1.msra.mxu0 0.0
    %346 = vmatprep.subr.mxu0 0.0
    %347 = vmatpush1.msra.mxu0 0.0
    %348 = vmatprep.subr.mxu0 0.0
    %349 = vmatpush1.msra.mxu0 0.0
    %350 = vmatprep.subr.mxu0 0.0
    %351 = vmatpush1.msra.mxu0 0.0
    %352 = vmatprep.subr.mxu0 0.0
    %353 = vmatpush1.msra.mxu0 0.0
    %354 = vmatprep.subr.mxu0 0.0
    %355 = vmatpush1.msra.mxu0 0.0
    %356 = vmatprep.mubr.f32.mxu0 0.0
    %357 = vmatmul.mubr.f32.gmra.mrb[0].mxu0 %v287
    %v358 = vpop.f32.mrb[0].mxu0
    %v359 = vadd.f32 0.0, %v358
    %v360 = vpop.f32.mrb[0].mxu0
    %361 = vmatprep.mubr.f32.mxu0 0.0
    %362 = vmatmul.mubr.f32.gmra.mrb[0].mxu0 %v290
    %v363 = vpop.f32.mrb[0].mxu0
    %v364 = vadd.f32 0.0, %v363
    %v365 = vpop.f32.mrb[0].mxu0
    %366 = vdwg.mxu0
    %367 = vrot.lane.b32.xlu0 %v156, 112
    %v368 = vpop.permute.xlu0 %367
    %369 = vrot.lane.b32.xlu0 %v161, 112
    %v370 = vpop.permute.xlu0 %369
    %371 = vrot.lane.b32.xlu0 %v156, 80
    %v372 = vpop.permute.xlu0 %371
    %373 = vrot.lane.b32.xlu0 %v161, 80
    %v374 = vpop.permute.xlu0 %373
    %v375 = vsel %vm174, %v368, 0
    %v377 = vsel %vm174, %v370, 0
    %v379 = vsel %vm174, %v372, 0
    %v381 = vsel %vm174, %v374, 0
    %383 = vmatprep.subr.mxu0 0.0
    %384 = vmatpush1.xpose.msra.mxu0 %v379
    %385 = vmatprep.subr.mxu0 0.0
    %386 = vmatpush1.xpose.msra.mxu0 %v381
    %387 = vmatprep.subr.mxu0 0.0
    %388 = vmatpush1.xpose.msra.mxu0 0.0
    %389 = vmatprep.subr.mxu0 0.0
    %390 = vmatpush1.xpose.msra.mxu0 0.0
    %391 = vmatprep.subr.mxu0 0.0
    %392 = vmatpush1.xpose.msra.mxu0 0.0
    %393 = vmatprep.subr.mxu0 0.0
    %394 = vmatpush1.xpose.msra.mxu0 0.0
    %395 = vmatprep.subr.mxu0 0.0
    %396 = vmatpush1.xpose.msra.mxu0 0.0
    %397 = vmatprep.subr.mxu0 0.0
    %398 = vmatpush1.xpose.msra.mxu0 0.0
    %399 = vmatprep.subr.mxu0 0.0
    %400 = vmatpush1.xpose.msra.mxu0 0.0
    %401 = vmatprep.subr.mxu0 0.0
    %402 = vmatpush1.xpose.msra.mxu0 0.0
    %403 = vmatprep.subr.mxu0 0.0
    %404 = vmatpush1.xpose.msra.mxu0 0.0
    %405 = vmatprep.subr.mxu0 0.0
    %406 = vmatpush1.xpose.msra.mxu0 0.0
    %407 = vmatprep.subr.mxu0 0.0
    %408 = vmatpush1.xpose.msra.mxu0 0.0
    %409 = vmatprep.subr.mxu0 0.0
    %410 = vmatpush1.xpose.msra.mxu0 0.0
    %411 = vmatprep.subr.mxu0 0.0
    %412 = vmatpush1.xpose.msra.mxu0 0.0
    %413 = vmatprep.subr.mxu0 0.0
    %414 = vmatpush1.xpose.msra.mxu0 0.0
    %415 = vmatprep.subr.mxu0 0.0
    %416 = vmatpush1.xpose.msra.mxu0 0.0
    %417 = vmatprep.subr.mxu0 0.0
    %418 = vmatpush1.xpose.msra.mxu0 0.0
    %419 = vmatprep.subr.mxu0 0.0
    %420 = vmatpush1.xpose.msra.mxu0 0.0
    %421 = vmatprep.subr.mxu0 0.0
    %422 = vmatpush1.xpose.msra.mxu0 0.0
    %423 = vmatprep.subr.mxu0 0.0
    %424 = vmatpush1.xpose.msra.mxu0 0.0
    %425 = vmatprep.subr.mxu0 0.0
    %426 = vmatpush1.xpose.msra.mxu0 0.0
    %427 = vmatprep.subr.mxu0 0.0
    %428 = vmatpush1.xpose.msra.mxu0 0.0
    %429 = vmatprep.subr.mxu0 0.0
    %430 = vmatpush1.xpose.msra.mxu0 0.0
    %431 = vmatprep.subr.mxu0 0.0
    %432 = vmatpush1.xpose.msra.mxu0 0.0
    %433 = vmatprep.subr.mxu0 0.0
    %434 = vmatpush1.xpose.msra.mxu0 0.0
    %435 = vmatprep.subr.mxu0 0.0
    %436 = vmatpush1.xpose.msra.mxu0 0.0
    %437 = vmatprep.subr.mxu0 0.0
    %438 = vmatpush1.xpose.msra.mxu0 0.0
    %439 = vmatprep.subr.mxu0 0.0
    %440 = vmatpush1.xpose.msra.mxu0 0.0
    %441 = vmatprep.subr.mxu0 0.0
    %442 = vmatpush1.xpose.msra.mxu0 0.0
    %443 = vmatprep.subr.mxu0 0.0
    %444 = vmatpush1.xpose.msra.mxu0 0.0
    %445 = vmatprep.subr.mxu0 0.0
    %446 = vmatpush1.xpose.msra.mxu0 0.0
    %447 = vmatprep.mubr.f32.mxu0 0.0
    %448 = vmatmul.mubr.f32.gmra.mrb[0].mxu0 %v375
    %v449 = vpop.f32.mrb[0].mxu0
    %v450 = vadd.f32 %v69, %v449
    %v451 = vpop.f32.mrb[0].mxu0
    %452 = vmatprep.mubr.f32.mxu0 0.0
    %453 = vmatmul.mubr.f32.gmra.mrb[0].mxu0 %v377
    %v454 = vpop.f32.mrb[0].mxu0
    %v455 = vadd.f32 %v70, %v454
    %v456 = vpop.f32.mrb[0].mxu0
    %457 = vdwg.mxu0
    %v458 = vsel %vm174, %v450, -inf
    %459 = vmax.xlane.f32.xlu0 %v458
    %v460 = vpop.xlane.xlu0 %459
    %v461 = vsel %vm174, %v455, -inf
    %462 = vmax.xlane.f32.xlu0 %v461
    %v463 = vpop.xlane.xlu0 %462
    %v464 = vsub.f32 %v450, %v460
    %v465 = vsub.f32 %v455, %v463
    %v466 = vmul.f32 %v464, 1.442695
    %v467 = vpow.pop %v466
    %v468 = vmul.f32 %v465, 1.442695
    %v469 = vpow.pop %v468
    %v470 = vsel %vm174, %v467, 0.0
    %471 = vadd.xlane.f32.xlu0 %v470
    %v472 = vpop.xlane.xlu0 %471
    %v473 = vsel %vm174, %v469, 0.0
    %474 = vadd.xlane.f32.xlu0 %v473
    %v475 = vpop.xlane.xlu0 %474
    %v476 = vrcp.pop %v472
    %v477 = vrcp.pop %v475
    %v478 = vmul.f32 %v467, %v476
    %v479 = vmul.f32 %v469, %v477
    %480 = vrot.lane.b32.xlu0 %v156, 48
    %v481 = vpop.permute.xlu0 %480
    %482 = vrot.lane.b32.xlu0 %v161, 48
    %v483 = vpop.permute.xlu0 %482
    %v487 = vsel %vm174, %v478, 0
    %v490 = vsel %vm174, %v479, 0
    %492 = vmatprep.subr.mxu0 0.0
    %493 = vmatpush1.msra.mxu0 %v481
    %494 = vmatprep.subr.mxu0 0.0
    %495 = vmatpush1.msra.mxu0 %v483
    %496 = vmatprep.subr.mxu0 0.0
    %497 = vmatpush1.msra.mxu0 0.0
    %498 = vmatprep.subr.mxu0 0.0
    %499 = vmatpush1.msra.mxu0 0.0
    %500 = vmatprep.subr.mxu0 0.0
    %501 = vmatpush1.msra.mxu0 0.0
    %502 = vmatprep.subr.mxu0 0.0
    %503 = vmatpush1.msra.mxu0 0.0
    %504 = vmatprep.subr.mxu0 0.0
    %505 = vmatpush1.msra.mxu0 0.0
    %506 = vmatprep.subr.mxu0 0.0
    %507 = vmatpush1.msra.mxu0 0.0
    %508 = vmatprep.subr.mxu0 0.0
    %509 = vmatpush1.msra.mxu0 0.0
    %510 = vmatprep.subr.mxu0 0.0
    %511 = vmatpush1.msra.mxu0 0.0
    %512 = vmatprep.subr.mxu0 0.0
    %513 = vmatpush1.msra.mxu0 0.0
    %514 = vmatprep.subr.mxu0 0.0
    %515 = vmatpush1.msra.mxu0 0.0
    %516 = vmatprep.subr.mxu0 0.0
    %517 = vmatpush1.msra.mxu0 0.0
    %518 = vmatprep.subr.mxu0 0.0
    %519 = vmatpush1.msra.mxu0 0.0
    %520 = vmatprep.subr.mxu0 0.0
    %521 = vmatpush1.msra.mxu0 0.0
    %522 = vmatprep.subr.mxu0 0.0
    %523 = vmatpush1.msra.mxu0 0.0
    %524 = vmatprep.subr.mxu0 0.0
    %525 = vmatpush1.msra.mxu0 0.0
    %526 = vmatprep.subr.mxu0 0.0
    %527 = vmatpush1.msra.mxu0 0.0
    %528 = vmatprep.subr.mxu0 0.0
    %529 = vmatpush1.msra.mxu0 0.0
    %530 = vmatprep.subr.mxu0 0.0
    %531 = vmatpush1.msra.mxu0 0.0
    %532 = vmatprep.subr.mxu0 0.0
    %533 = vmatpush1.msra.mxu0 0.0
    %534 = vmatprep.subr.mxu0 0.0
    %535 = vmatpush1.msra.mxu0 0.0
    %536 = vmatprep.subr.mxu0 0.0
    %537 = vmatpush1.msra.mxu0 0.0
    %538 = vmatprep.subr.mxu0 0.0
    %539 = vmatpush1.msra.mxu0 0.0
    %540 = vmatprep.subr.mxu0 0.0
    %541 = vmatpush1.msra.mxu0 0.0
    %542 = vmatprep.subr.mxu0 0.0
    %543 = vmatpush1.msra.mxu0 0.0
    %544 = vmatprep.subr.mxu0 0.0
    %545 = vmatpush1.msra.mxu0 0.0
    %546 = vmatprep.subr.mxu0 0.0
    %547 = vmatpush1.msra.mxu0 0.0
    %548 = vmatprep.subr.mxu0 0.0
    %549 = vmatpush1.msra.mxu0 0.0
    %550 = vmatprep.subr.mxu0 0.0
    %551 = vmatpush1.msra.mxu0 0.0
    %552 = vmatprep.subr.mxu0 0.0
    %553 = vmatpush1.msra.mxu0 0.0
    %554 = vmatprep.subr.mxu0 0.0
    %555 = vmatpush1.msra.mxu0 0.0
    %556 = vmatprep.mubr.f32.mxu0 0.0
    %557 = vmatmul.mubr.f32.gmra.mrb[0].mxu0 %v487
    %v558 = vpop.f32.mrb[0].mxu0
    %v559 = vadd.f32 0.0, %v558
    %v560 = vpop.f32.mrb[0].mxu0
    %561 = vmatprep.mubr.f32.mxu0 0.0
    %562 = vmatmul.mubr.f32.gmra.mrb[0].mxu0 %v490
    %v563 = vpop.f32.mrb[0].mxu0
    %v564 = vadd.f32 0.0, %v563
    %v565 = vpop.f32.mrb[0].mxu0
    %566 = vdwg.mxu0
    %v568 = vsel %vm174, %v559, 0
    %v571 = vsel %vm174, %v564, 0
    %573 = vmatprep.subr.mxu0 0.0
    %574 = vmatpush1.msra.mxu0 %v166
    %575 = vmatprep.subr.mxu0 0.0
    %576 = vmatpush1.msra.mxu0 %v167
    %577 = vmatprep.subr.mxu0 0.0
    %578 = vmatpush1.msra.mxu0 0.0
    %579 = vmatprep.subr.mxu0 0.0
    %580 = vmatpush1.msra.mxu0 0.0
    %581 = vmatprep.subr.mxu0 0.0
    %582 = vmatpush1.msra.mxu0 0.0
    %583 = vmatprep.subr.mxu0 0.0
    %584 = vmatpush1.msra.mxu0 0.0
    %585 = vmatprep.subr.mxu0 0.0
    %586 = vmatpush1.msra.mxu0 0.0
    %587 = vmatprep.subr.mxu0 0.0
    %588 = vmatpush1.msra.mxu0 0.0
    %589 = vmatprep.subr.mxu0 0.0
    %590 = vmatpush1.msra.mxu0 0.0
    %591 = vmatprep.subr.mxu0 0.0
    %592 = vmatpush1.msra.mxu0 0.0
    %593 = vmatprep.subr.mxu0 0.0
    %594 = vmatpush1.msra.mxu0 0.0
    %595 = vmatprep.subr.mxu0 0.0
    %596 = vmatpush1.msra.mxu0 0.0
    %597 = vmatprep.subr.mxu0 0.0
    %598 = vmatpush1.msra.mxu0 0.0
    %599 = vmatprep.subr.mxu0 0.0
    %600 = vmatpush1.msra.mxu0 0.0
    %601 = vmatprep.subr.mxu0 0.0
    %602 = vmatpush1.msra.mxu0 0.0
    %603 = vmatprep.subr.mxu0 0.0
    %604 = vmatpush1.msra.mxu0 0.0
    %605 = vmatprep.subr.mxu0 0.0
    %606 = vmatpush1.msra.mxu0 0.0
    %607 = vmatprep.subr.mxu0 0.0
    %608 = vmatpush1.msra.mxu0 0.0
    %609 = vmatprep.subr.mxu0 0.0
    %610 = vmatpush1.msra.mxu0 0.0
    %611 = vmatprep.subr.mxu0 0.0
    %612 = vmatpush1.msra.mxu0 0.0
    %613 = vmatprep.subr.mxu0 0.0
    %614 = vmatpush1.msra.mxu0 0.0
    %615 = vmatprep.subr.mxu0 0.0
    %616 = vmatpush1.msra.mxu0 0.0
    %617 = vmatprep.subr.mxu0 0.0
    %618 = vmatpush1.msra.mxu0 0.0
    %619 = vmatprep.subr.mxu0 0.0
    %620 = vmatpush1.msra.mxu0 0.0
    %621 = vmatprep.subr.mxu0 0.0
    %622 = vmatpush1.msra.mxu0 0.0
    %623 = vmatprep.subr.mxu0 0.0
    %624 = vmatpush1.msra.mxu0 0.0
    %625 = vmatprep.subr.mxu0 0.0
    %626 = vmatpush1.msra.mxu0 0.0
    %627 = vmatprep.subr.mxu0 0.0
    %628 = vmatpush1.msra.mxu0 0.0
    %629 = vmatprep.subr.mxu0 0.0
    %630 = vmatpush1.msra.mxu0 0.0
    %631 = vmatprep.subr.mxu0 0.0
    %632 = vmatpush1.msra.mxu0 0.0
    %633 = vmatprep.subr.mxu0 0.0
    %634 = vmatpush1.msra.mxu0 0.0
    %635 = vmatprep.subr.mxu0 0.0
    %636 = vmatpush1.msra.mxu0 0.0
    %637 = vmatprep.mubr.f32.mxu0 0.0
    %638 = vmatmul.mubr.f32.gmra.mrb[0].mxu0 %v568
    %v639 = vpop.f32.mrb[0].mxu0
    %v640 = vadd.f32 0.0, %v639
    %v641 = vpop.f32.mrb[0].mxu0
    %642 = vmatprep.mubr.f32.mxu0 0.0
    %643 = vmatmul.mubr.f32.gmra.mrb[0].mxu0 %v571
    %v644 = vpop.f32.mrb[0].mxu0
    %v645 = vadd.f32 0.0, %v644
    %v646 = vpop.f32.mrb[0].mxu0
    %647 = vdwg.mxu0
    %v649 = vsel %vm174, %v359, 0
    %v652 = vsel %vm174, %v364, 0
    %654 = vmatprep.subr.mxu0 0.0
    %655 = vmatpush1.msra.mxu0 %v164
    %656 = vmatprep.subr.mxu0 0.0
    %657 = vmatpush1.msra.mxu0 %v165
    %658 = vmatprep.subr.mxu0 0.0
    %659 = vmatpush1.msra.mxu0 0.0
    %660 = vmatprep.subr.mxu0 0.0
    %661 = vmatpush1.msra.mxu0 0.0
    %662 = vmatprep.subr.mxu0 0.0
    %663 = vmatpush1.msra.mxu0 0.0
    %664 = vmatprep.subr.mxu0 0.0
    %665 = vmatpush1.msra.mxu0 0.0
    %666 = vmatprep.subr.mxu0 0.0
    %667 = vmatpush1.msra.mxu0 0.0
    %668 = vmatprep.subr.mxu0 0.0
    %669 = vmatpush1.msra.mxu0 0.0
    %670 = vmatprep.subr.mxu0 0.0
    %671 = vmatpush1.msra.mxu0 0.0
    %672 = vmatprep.subr.mxu0 0.0
    %673 = vmatpush1.msra.mxu0 0.0
    %674 = vmatprep.subr.mxu0 0.0
    %675 = vmatpush1.msra.mxu0 0.0
    %676 = vmatprep.subr.mxu0 0.0
    %677 = vmatpush1.msra.mxu0 0.0
    %678 = vmatprep.subr.mxu0 0.0
    %679 = vmatpush1.msra.mxu0 0.0
    %680 = vmatprep.subr.mxu0 0.0
    %681 = vmatpush1.msra.mxu0 0.0
    %682 = vmatprep.subr.mxu0 0.0
    %683 = vmatpush1.msra.mxu0 0.0
    %684 = vmatprep.subr.mxu0 0.0
    %685 = vmatpush1.msra.mxu0 0.0
    %686 = vmatprep.subr.mxu0 0.0
    %687 = vmatpush1.msra.mxu0 0.0
    %688 = vmatprep.subr.mxu0 0.0
    %689 = vmatpush1.msra.mxu0 0.0
    %690 = vmatprep.subr.mxu0 0.0
    %691 = vmatpush1.msra.mxu0 0.0
    %692 = vmatprep.subr.mxu0 0.0
    %693 = vmatpush1.msra.mxu0 0.0
    %694 = vmatprep.subr.mxu0 0.0
    %695 = vmatpush1.msra.mxu0 0.0
    %696 = vmatprep.subr.mxu0 0.0
    %697 = vmatpush1.msra.mxu0 0.0
    %698 = vmatprep.subr.mxu0 0.0
    %699 = vmatpush1.msra.mxu0 0.0
    %700 = vmatprep.subr.mxu0 0.0
    %701 = vmatpush1.msra.mxu0 0.0
    %702 = vmatprep.subr.mxu0 0.0
    %703 = vmatpush1.msra.mxu0 0.0
    %704 = vmatprep.subr.mxu0 0.0
    %705 = vmatpush1.msra.mxu0 0.0
    %706 = vmatprep.subr.mxu0 0.0
    %707 = vmatpush1.msra.mxu0 0.0
    %708 = vmatprep.subr.mxu0 0.0
    %709 = vmatpush1.msra.mxu0 0.0
    %710 = vmatprep.subr.mxu0 0.0
    %711 = vmatpush1.msra.mxu0 0.0
    %712 = vmatprep.subr.mxu0 0.0
    %713 = vmatpush1.msra.mxu0 0.0
    %714 = vmatprep.subr.mxu0 0.0
    %715 = vmatpush1.msra.mxu0 0.0
    %716 = vmatprep.subr.mxu0 0.0
    %717 = vmatpush1.msra.mxu0 0.0
    %718 = vmatprep.mubr.f32.mxu0 0.0
    %719 = vmatmul.mubr.f32.gmra.mrb[0].mxu0 %v649
    %v720 = vpop.f32.mrb[0].mxu0
    %v721 = vadd.f32 %v640, %v720
    %v722 = vpop.f32.mrb[0].mxu0
    %723 = vmatprep.mubr.f32.mxu0 0.0
    %724 = vmatmul.mubr.f32.gmra.mrb[0].mxu0 %v652
    %v725 = vpop.f32.mrb[0].mxu0
    %v726 = vadd.f32 %v645, %v725
    %v727 = vpop.f32.mrb[0].mxu0
    %728 = vdwg.mxu0
    %v729 = vld [vmem:[%s6] sm:$0x1]
    %v731 = vlaneseq
    %v732 = vshrl.u32 %v731, 7
    %v733 = vsub.s32 0, %v732
    %v734 = vrot.slane %v729, %v733
    %v736 = vadd.f32 %v721, %v734
    %v737 = vadd.f32 %v726, %v734
    %v738 = vadd.f32 %v67, %v736
    %v739 = vadd.f32 %v68, %v737
    %v740 = vld [vmem:[%s7] sm:$0x1]
    %v741 = vld [vmem:[%s8] sm:$0x1]
    %v742 = vsel %vm82, %v738, 0.0
    %743 = vadd.xlane.f32.xlu0 %v742
    %v744 = vpop.xlane.xlu0 %743
    %v745 = vsel %vm82, %v739, 0.0
    %746 = vadd.xlane.f32.xlu0 %v745
    %v747 = vpop.xlane.xlu0 %746
    %v748 = vrcp.pop 32.0
    %v749 = vmul.f32 %v744, %v748
    %v750 = vmul.f32 %v747, %v748
    %v751 = vsub.f32 %v738, %v749
    %v752 = vsub.f32 %v739, %v750
    %v753 = vmul.f32 %v751, %v751
    %v754 = vmul.f32 %v752, %v752
    %v755 = vsel %vm82, %v753, 0.0
    %756 = vadd.xlane.f32.xlu0 %v755
    %v757 = vpop.xlane.xlu0 %756
    %v758 = vsel %vm82, %v754, 0.0
    %759 = vadd.xlane.f32.xlu0 %v758
    %v760 = vpop.xlane.xlu0 %759
    %v761 = vmul.f32 %v757, %v748
    %v762 = vmul.f32 %v760, %v748
    %v763 = vadd.f32 %v761, 1e-05
    %v764 = vadd.f32 %v762, 1e-05
    %v765 = vrsqrt.pop %v763
    %v766 = vrsqrt.pop %v764
    %v767 = vmul.f32 %v751, %v765
    %v768 = vmul.f32 %v752, %v766
    %v770 = vlaneseq
    %v771 = vshrl.u32 %v770, 7
    %v772 = vsub.s32 0, %v771
    %v773 = vrot.slane %v740, %v772
    %v775 = vmul.f32 %v767, %v773
    %v776 = vmul.f32 %v768, %v773
    %v778 = vlaneseq
    %v779 = vshrl.u32 %v778, 7
    %v780 = vsub.s32 0, %v779
    %v781 = vrot.slane %v741, %v780
    %v783 = vadd.f32 %v775, %v781
    %v784 = vadd.f32 %v776, %v781
    %v785 = vld [vmem:[%s9] sm:$0xff]
    %v786 = vld [vmem:[%s9 + $0x8] sm:$0xff]
    %v787 = vld [vmem:[%s9 + $0x10] sm:$0xff]
    %v788 = vld [vmem:[%s9 + $0x18] sm:$0xff]
    %v789 = vld [vmem:[%s10] sm:$0x1]
    %v791 = vlaneseq
    %v792 = vshrl.u32 %v791, 7
    %v793 = vsub.s32 0, %v792
    %v794 = vrot.slane %v789, %v793
    %v797 = vsel %vm82, %v783, 0
    %v800 = vsel %vm82, %v784, 0
    %802 = vmatprep.subr.mxu0 0.0
    %803 = vmatpush1.msra.mxu0 %v785
    %804 = vmatprep.subr.mxu0 0.0
    %805 = vmatpush1.msra.mxu0 %v786
    %806 = vmatprep.subr.mxu0 0.0
    %807 = vmatpush1.msra.mxu0 %v787
    %808 = vmatprep.subr.mxu0 0.0
    %809 = vmatpush1.msra.mxu0 %v788
    %810 = vmatprep.subr.mxu0 0.0
    %811 = vmatpush1.msra.mxu0 0.0
    %812 = vmatprep.subr.mxu0 0.0
    %813 = vmatpush1.msra.mxu0 0.0
    %814 = vmatprep.subr.mxu0 0.0
    %815 = vmatpush1.msra.mxu0 0.0
    %816 = vmatprep.subr.mxu0 0.0
    %817 = vmatpush1.msra.mxu0 0.0
    %818 = vmatprep.subr.mxu0 0.0
    %819 = vmatpush1.msra.mxu0 0.0
    %820 = vmatprep.subr.mxu0 0.0
    %821 = vmatpush1.msra.mxu0 0.0
    %822 = vmatprep.subr.mxu0 0.0
    %823 = vmatpush1.msra.mxu0 0.0
    %824 = vmatprep.subr.mxu0 0.0
    %825 = vmatpush1.msra.mxu0 0.0
    %826 = vmatprep.subr.mxu0 0.0
    %827 = vmatpush1.msra.mxu0 0.0
    %828 = vmatprep.subr.mxu0 0.0
    %829 = vmatpush1.msra.mxu0 0.0
    %830 = vmatprep.subr.mxu0 0.0
    %831 = vmatpush1.msra.mxu0 0.0
    %832 = vmatprep.subr.mxu0 0.0
    %833 = vmatpush1.msra.mxu0 0.0
    %834 = vmatprep.subr.mxu0 0.0
    %835 = vmatpush1.msra.mxu0 0.0
    %836 = vmatprep.subr.mxu0 0.0
    %837 = vmatpush1.msra.mxu0 0.0
    %838 = vmatprep.subr.mxu0 0.0
    %839 = vmatpush1.msra.mxu0 0.0
    %840 = vmatprep.subr.mxu0 0.0
    %841 = vmatpush1.msra.mxu0 0.0
    %842 = vmatprep.subr.mxu0 0.0
    %843 = vmatpush1.msra.mxu0 0.0
    %844 = vmatprep.subr.mxu0 0.0
    %845 = vmatpush1.msra.mxu0 0.0
    %846 = vmatprep.subr.mxu0 0.0
    %847 = vmatpush1.msra.mxu0 0.0
    %848 = vmatprep.subr.mxu0 0.0
    %849 = vmatpush1.msra.mxu0 0.0
    %850 = vmatprep.subr.mxu0 0.0
    %851 = vmatpush1.msra.mxu0 0.0
    %852 = vmatprep.subr.mxu0 0.0
    %853 = vmatpush1.msra.mxu0 0.0
    %854 = vmatprep.subr.mxu0 0.0
    %855 = vmatpush1.msra.mxu0 0.0
    %856 = vmatprep.subr.mxu0 0.0
    %857 = vmatpush1.msra.mxu0 0.0
    %858 = vmatprep.subr.mxu0 0.0
    %859 = vmatpush1.msra.mxu0 0.0
    %860 = vmatprep.subr.mxu0 0.0
    %861 = vmatpush1.msra.mxu0 0.0
    %862 = vmatprep.subr.mxu0 0.0
    %863 = vmatpush1.msra.mxu0 0.0
    %864 = vmatprep.subr.mxu0 0.0
    %865 = vmatpush1.msra.mxu0 0.0
    %866 = vmatprep.mubr.f32.mxu0 0.0
    %867 = vmatmul.mubr.f32.gmra.mrb[0].mxu0 %v797
    %v868 = vpop.f32.mrb[0].mxu0
    %v869 = vadd.f32 %v794, %v868
    %v870 = vpop.f32.mrb[0].mxu0
    %871 = vmatprep.mubr.f32.mxu0 0.0
    %872 = vmatmul.mubr.f32.gmra.mrb[0].mxu0 %v800
    %v873 = vpop.f32.mrb[0].mxu0
    %v874 = vadd.f32 %v794, %v873
    %v875 = vpop.f32.mrb[0].mxu0
    %876 = vdwg.mxu0
    %v877 = vmax.f32 %v869, 0.0
    %v878 = vmax.f32 %v874, 0.0
    %v879 = vld [vmem:[%s11] sm:$0xff]
    %v880 = vld [vmem:[%s11 + $0x8] sm:$0xff]
    %v881 = vld [vmem:[%s11 + $0x10] sm:$0xff]
    %v882 = vld [vmem:[%s11 + $0x18] sm:$0xff]
    %v883 = vld [vmem:[%s11 + $0x20] sm:$0xff]
    %v884 = vld [vmem:[%s11 + $0x28] sm:$0xff]
    %v885 = vld [vmem:[%s11 + $0x30] sm:$0xff]
    %v886 = vld [vmem:[%s11 + $0x38] sm:$0xff]
    %v887 = vld [vmem:[%s11 + $0x40] sm:$0xff]
    %v888 = vld [vmem:[%s11 + $0x48] sm:$0xff]
    %v889 = vld [vmem:[%s11 + $0x50] sm:$0xff]
    %v890 = vld [vmem:[%s11 + $0x58] sm:$0xff]
    %v891 = vld [vmem:[%s11 + $0x60] sm:$0xff]
    %v892 = vld [vmem:[%s11 + $0x68] sm:$0xff]
    %v893 = vld [vmem:[%s11 + $0x70] sm:$0xff]
    %v894 = vld [vmem:[%s11 + $0x78] sm:$0xff]
    %v895 = vld [vmem:[%s12] sm:$0x1]
    %v897 = vlaneseq
    %v898 = vshrl.u32 %v897, 7
    %v899 = vsub.s32 0, %v898
    %v900 = vrot.slane %v895, %v899
    %902 = vmatprep.subr.mxu0 0.0
    %903 = vmatpush1.msra.mxu0 %v879
    %904 = vmatprep.subr.mxu0 0.0
    %905 = vmatpush1.msra.mxu0 %v880
    %906 = vmatprep.subr.mxu0 0.0
    %907 = vmatpush1.msra.mxu0 %v881
    %908 = vmatprep.subr.mxu0 0.0
    %909 = vmatpush1.msra.mxu0 %v882
    %910 = vmatprep.subr.mxu0 0.0
    %911 = vmatpush1.msra.mxu0 %v883
    %912 = vmatprep.subr.mxu0 0.0
    %913 = vmatpush1.msra.mxu0 %v884
    %914 = vmatprep.subr.mxu0 0.0
    %915 = vmatpush1.msra.mxu0 %v885
    %916 = vmatprep.subr.mxu0 0.0
    %917 = vmatpush1.msra.mxu0 %v886
    %918 = vmatprep.subr.mxu0 0.0
    %919 = vmatpush1.msra.mxu0 %v887
    %920 = vmatprep.subr.mxu0 0.0
    %921 = vmatpush1.msra.mxu0 %v888
    %922 = vmatprep.subr.mxu0 0.0
    %923 = vmatpush1.msra.mxu0 %v889
    %924 = vmatprep.subr.mxu0 0.0
    %925 = vmatpush1.msra.mxu0 %v890
    %926 = vmatprep.subr.mxu0 0.0
    %927 = vmatpush1.msra.mxu0 %v891
    %928 = vmatprep.subr.mxu0 0.0
    %929 = vmatpush1.msra.mxu0 %v892
    %930 = vmatprep.subr.mxu0 0.0
    %931 = vmatpush1.msra.mxu0 %v893
    %932 = vmatprep.subr.mxu0 0.0
    %933 = vmatpush1.msra.mxu0 %v894
    %934 = vmatprep.subr.mxu0 0.0
    %935 = vmatpush1.msra.mxu0 0.0
    %936 = vmatprep.subr.mxu0 0.0
    %937 = vmatpush1.msra.mxu0 0.0
    %938 = vmatprep.subr.mxu0 0.0
    %939 = vmatpush1.msra.mxu0 0.0
    %940 = vmatprep.subr.mxu0 0.0
    %941 = vmatpush1.msra.mxu0 0.0
    %942 = vmatprep.subr.mxu0 0.0
    %943 = vmatpush1.msra.mxu0 0.0
    %944 = vmatprep.subr.mxu0 0.0
    %945 = vmatpush1.msra.mxu0 0.0
    %946 = vmatprep.subr.mxu0 0.0
    %947 = vmatpush1.msra.mxu0 0.0
    %948 = vmatprep.subr.mxu0 0.0
    %949 = vmatpush1.msra.mxu0 0.0
    %950 = vmatprep.subr.mxu0 0.0
    %951 = vmatpush1.msra.mxu0 0.0
    %952 = vmatprep.subr.mxu0 0.0
    %953 = vmatpush1.msra.mxu0 0.0
    %954 = vmatprep.subr.mxu0 0.0
    %955 = vmatpush1.msra.mxu0 0.0
    %956 = vmatprep.subr.mxu0 0.0
    %957 = vmatpush1.msra.mxu0 0.0
    %958 = vmatprep.subr.mxu0 0.0
    %959 = vmatpush1.msra.mxu0 0.0
    %960 = vmatprep.subr.mxu0 0.0
    %961 = vmatpush1.msra.mxu0 0.0
    %962 = vmatprep.subr.mxu0 0.0
    %963 = vmatpush1.msra.mxu0 0.0
    %964 = vmatprep.subr.mxu0 0.0
    %965 = vmatpush1.msra.mxu0 0.0
    %966 = vmatprep.mubr.f32.mxu0 0.0
    %967 = vmatmul.mubr.f32.gmra.mrb[0].mxu0 %v877
    %v968 = vpop.f32.mrb[0].mxu0
    %v969 = vadd.f32 %v900, %v968
    %v970 = vpop.f32.mrb[0].mxu0
    %971 = vmatprep.mubr.f32.mxu0 0.0
    %972 = vmatmul.mubr.f32.gmra.mrb[0].mxu0 %v878
    %v973 = vpop.f32.mrb[0].mxu0
    %v974 = vadd.f32 %v900, %v973
    %v975 = vpop.f32.mrb[0].mxu0
    %976 = vdwg.mxu0
    %v977 = vadd.f32 %v783, %v969
    %v978 = vadd.f32 %v784, %v974
    %v979 = vld [vmem:[%s13] sm:$0x1]
    %v980 = vld [vmem:[%s14] sm:$0x1]
    %v981 = vsel %vm82, %v977, 0.0
    %982 = vadd.xlane.f32.xlu0 %v981
    %v983 = vpop.xlane.xlu0 %982
    %v984 = vsel %vm82, %v978, 0.0
    %985 = vadd.xlane.f32.xlu0 %v984
    %v986 = vpop.xlane.xlu0 %985
    %v987 = vmul.f32 %v983, %v748
    %v988 = vmul.f32 %v986, %v748
    %v989 = vsub.f32 %v977, %v987
    %v990 = vsub.f32 %v978, %v988
    %v991 = vmul.f32 %v989, %v989
    %v992 = vmul.f32 %v990, %v990
    %v993 = vsel %vm82, %v991, 0.0
    %994 = vadd.xlane.f32.xlu0 %v993
    %v995 = vpop.xlane.xlu0 %994
    %v996 = vsel %vm82, %v992, 0.0
    %997 = vadd.xlane.f32.xlu0 %v996
    %v998 = vpop.xlane.xlu0 %997
    %v999 = vmul.f32 %v995, %v748
    %v1000 = vmul.f32 %v998, %v748
    %v1001 = vadd.f32 %v999, 1e-05
    %v1002 = vadd.f32 %v1000, 1e-05
    %v1003 = vrsqrt.pop %v1001
    %v1004 = vrsqrt.pop %v1002
    %v1005 = vmul.f32 %v989, %v1003
    %v1006 = vmul.f32 %v990, %v1004
    %v1008 = vlaneseq
    %v1009 = vshrl.u32 %v1008, 7
    %v1010 = vsub.s32 0, %v1009
    %v1011 = vrot.slane %v979, %v1010
    %v1013 = vmul.f32 %v1005, %v1011
    %v1014 = vmul.f32 %v1006, %v1011
    %v1016 = vlaneseq
    %v1017 = vshrl.u32 %v1016, 7
    %v1018 = vsub.s32 0, %v1017
    %v1019 = vrot.slane %v980, %v1018
    %v1021 = vadd.f32 %v1013, %v1019
    %v1022 = vadd.f32 %v1014, %v1019
    %s1023 = scalar_lea.vmem %s3, 32
    %v1024 = vld [vmem:[%s1023] sm:$0xff]
    %v1025 = vld [vmem:[%s1023 + $0x8] sm:$0xff]
    %v1026 = vld [vmem:[%s1023 + $0x10] sm:$0xff]
    %v1027 = vld [vmem:[%s1023 + $0x18] sm:$0xff]
    %s1028 = scalar_lea.vmem %s4, 1
    %v1029 = vld [vmem:[%s1028] sm:$0x1]
    %v1031 = vlaneseq
    %v1032 = vshrl.u32 %v1031, 7
    %v1033 = vsub.s32 0, %v1032
    %v1034 = vrot.slane %v1029, %v1033
    %v1037 = vsel %vm82, %v1021, 0
    %v1040 = vsel %vm82, %v1022, 0
    %1042 = vmatprep.subr.mxu0 0.0
    %1043 = vmatpush1.msra.mxu0 %v1024
    %1044 = vmatprep.subr.mxu0 0.0
    %1045 = vmatpush1.msra.mxu0 %v1025
    %1046 = vmatprep.subr.mxu0 0.0
    %1047 = vmatpush1.msra.mxu0 %v1026
    %1048 = vmatprep.subr.mxu0 0.0
    %1049 = vmatpush1.msra.mxu0 %v1027
    %1050 = vmatprep.subr.mxu0 0.0
    %1051 = vmatpush1.msra.mxu0 0.0
    %1052 = vmatprep.subr.mxu0 0.0
    %1053 = vmatpush1.msra.mxu0 0.0
    %1054 = vmatprep.subr.mxu0 0.0
    %1055 = vmatpush1.msra.mxu0 0.0
    %1056 = vmatprep.subr.mxu0 0.0
    %1057 = vmatpush1.msra.mxu0 0.0
    %1058 = vmatprep.subr.mxu0 0.0
    %1059 = vmatpush1.msra.mxu0 0.0
    %1060 = vmatprep.subr.mxu0 0.0
    %1061 = vmatpush1.msra.mxu0 0.0
    %1062 = vmatprep.subr.mxu0 0.0
    %1063 = vmatpush1.msra.mxu0 0.0
    %1064 = vmatprep.subr.mxu0 0.0
    %1065 = vmatpush1.msra.mxu0 0.0
    %1066 = vmatprep.subr.mxu0 0.0
    %1067 = vmatpush1.msra.mxu0 0.0
    %1068 = vmatprep.subr.mxu0 0.0
    %1069 = vmatpush1.msra.mxu0 0.0
    %1070 = vmatprep.subr.mxu0 0.0
    %1071 = vmatpush1.msra.mxu0 0.0
    %1072 = vmatprep.subr.mxu0 0.0
    %1073 = vmatpush1.msra.mxu0 0.0
    %1074 = vmatprep.subr.mxu0 0.0
    %1075 = vmatpush1.msra.mxu0 0.0
    %1076 = vmatprep.subr.mxu0 0.0
    %1077 = vmatpush1.msra.mxu0 0.0
    %1078 = vmatprep.subr.mxu0 0.0
    %1079 = vmatpush1.msra.mxu0 0.0
    %1080 = vmatprep.subr.mxu0 0.0
    %1081 = vmatpush1.msra.mxu0 0.0
    %1082 = vmatprep.subr.mxu0 0.0
    %1083 = vmatpush1.msra.mxu0 0.0
    %1084 = vmatprep.subr.mxu0 0.0
    %1085 = vmatpush1.msra.mxu0 0.0
    %1086 = vmatprep.subr.mxu0 0.0
    %1087 = vmatpush1.msra.mxu0 0.0
    %1088 = vmatprep.subr.mxu0 0.0
    %1089 = vmatpush1.msra.mxu0 0.0
    %1090 = vmatprep.subr.mxu0 0.0
    %1091 = vmatpush1.msra.mxu0 0.0
    %1092 = vmatprep.subr.mxu0 0.0
    %1093 = vmatpush1.msra.mxu0 0.0
    %1094 = vmatprep.subr.mxu0 0.0
    %1095 = vmatpush1.msra.mxu0 0.0
    %1096 = vmatprep.subr.mxu0 0.0
    %1097 = vmatpush1.msra.mxu0 0.0
    %1098 = vmatprep.subr.mxu0 0.0
    %1099 = vmatpush1.msra.mxu0 0.0
    %1100 = vmatprep.subr.mxu0 0.0
    %1101 = vmatpush1.msra.mxu0 0.0
    %1102 = vmatprep.subr.mxu0 0.0
    %1103 = vmatpush1.msra.mxu0 0.0
    %1104 = vmatprep.subr.mxu0 0.0
    %1105 = vmatpush1.msra.mxu0 0.0
    %1106 = vmatprep.mubr.f32.mxu0 0.0
    %1107 = vmatmul.mubr.f32.gmra.mrb[0].mxu0 %v1037
    %v1108 = vpop.f32.mrb[0].mxu0
    %v1109 = vadd.f32 %v1034, %v1108
    %v1110 = vpop.f32.mrb[0].mxu0
    %1111 = vmatprep.mubr.f32.mxu0 0.0
    %1112 = vmatmul.mubr.f32.gmra.mrb[0].mxu0 %v1040
    %v1113 = vpop.f32.mrb[0].mxu0
    %v1114 = vadd.f32 %v1034, %v1113
    %v1115 = vpop.f32.mrb[0].mxu0
    %1116 = vdwg.mxu0
    %s1117 = scalar_lea.vmem %s5, 32
    %v1118 = vld [vmem:[%s1117] sm:$0xff]
    %v1119 = vld [vmem:[%s1117 + $0x8] sm:$0xff]
    %v1120 = vld [vmem:[%s1117 + $0x10] sm:$0xff]
    %v1121 = vld [vmem:[%s1117 + $0x18] sm:$0xff]
    %1124 = vrot.lane.b32.xlu0 %v1109, 96
    %v1125 = vpop.permute.xlu0 %1124
    %1126 = vrot.lane.b32.xlu0 %v1114, 96
    %v1127 = vpop.permute.xlu0 %1126
    %v1128 = vsel %vm174, %v1109, 0
    %v1130 = vsel %vm174, %v1114, 0
    %v1132 = vsel %vm174, %v1125, 0
    %v1134 = vsel %vm174, %v1127, 0
    %1136 = vmatprep.subr.mxu0 0.0
    %1137 = vmatpush1.xpose.msra.mxu0 %v1132
    %1138 = vmatprep.subr.mxu0 0.0
    %1139 = vmatpush1.xpose.msra.mxu0 %v1134
    %1140 = vmatprep.subr.mxu0 0.0
    %1141 = vmatpush1.xpose.msra.mxu0 0.0
    %1142 = vmatprep.subr.mxu0 0.0
    %1143 = vmatpush1.xpose.msra.mxu0 0.0
    %1144 = vmatprep.subr.mxu0 0.0
    %1145 = vmatpush1.xpose.msra.mxu0 0.0
    %1146 = vmatprep.subr.mxu0 0.0
    %1147 = vmatpush1.xpose.msra.mxu0 0.0
    %1148 = vmatprep.subr.mxu0 0.0
    %1149 = vmatpush1.xpose.msra.mxu0 0.0
    %1150 = vmatprep.subr.mxu0 0.0
    %1151 = vmatpush1.xpose.msra.mxu0 0.0
    %1152 = vmatprep.subr.mxu0 0.0
    %1153 = vmatpush1.xpose.msra.mxu0 0.0
    %1154 = vmatprep.subr.mxu0 0.0
    %1155 = vmatpush1.xpose.msra.mxu0 0.0
    %1156 = vmatprep.subr.mxu0 0.0
    %1157 = vmatpush1.xpose.msra.mxu0 0.0
    %1158 = vmatprep.subr.mxu0 0.0
    %1159 = vmatpush1.xpose.msra.mxu0 0.0
    %1160 = vmatprep.subr.mxu0 0.0
    %1161 = vmatpush1.xpose.msra.mxu0 0.0
    %1162 = vmatprep.subr.mxu0 0.0
    %1163 = vmatpush1.xpose.msra.mxu0 0.0
    %1164 = vmatprep.subr.mxu0 0.0
    %1165 = vmatpush1.xpose.msra.mxu0 0.0
    %1166 = vmatprep.subr.mxu0 0.0
    %1167 = vmatpush1.xpose.msra.mxu0 0.0
    %1168 = vmatprep.subr.mxu0 0.0
    %1169 = vmatpush1.xpose.msra.mxu0 0.0
    %1170 = vmatprep.subr.mxu0 0.0
    %1171 = vmatpush1.xpose.msra.mxu0 0.0
    %1172 = vmatprep.subr.mxu0 0.0
    %1173 = vmatpush1.xpose.msra.mxu0 0.0
    %1174 = vmatprep.subr.mxu0 0.0
    %1175 = vmatpush1.xpose.msra.mxu0 0.0
    %1176 = vmatprep.subr.mxu0 0.0
    %1177 = vmatpush1.xpose.msra.mxu0 0.0
    %1178 = vmatprep.subr.mxu0 0.0
    %1179 = vmatpush1.xpose.msra.mxu0 0.0
    %1180 = vmatprep.subr.mxu0 0.0
    %1181 = vmatpush1.xpose.msra.mxu0 0.0
    %1182 = vmatprep.subr.mxu0 0.0
    %1183 = vmatpush1.xpose.msra.mxu0 0.0
    %1184 = vmatprep.subr.mxu0 0.0
    %1185 = vmatpush1.xpose.msra.mxu0 0.0
    %1186 = vmatprep.subr.mxu0 0.0
    %1187 = vmatpush1.xpose.msra.mxu0 0.0
    %1188 = vmatprep.subr.mxu0 0.0
    %1189 = vmatpush1.xpose.msra.mxu0 0.0
    %1190 = vmatprep.subr.mxu0 0.0
    %1191 = vmatpush1.xpose.msra.mxu0 0.0
    %1192 = vmatprep.subr.mxu0 0.0
    %1193 = vmatpush1.xpose.msra.mxu0 0.0
    %1194 = vmatprep.subr.mxu0 0.0
    %1195 = vmatpush1.xpose.msra.mxu0 0.0
    %1196 = vmatprep.subr.mxu0 0.0
    %1197 = vmatpush1.xpose.msra.mxu0 0.0
    %1198 = vmatprep.subr.mxu0 0.0
    %1199 = vmatpush1.xpose.msra.mxu0 0.0
    %1200 = vmatprep.mubr.f32.mxu0 0.0
    %1201 = vmatmul.mubr.f32.gmra.mrb[0].mxu0 %v1128
    %v1202 = vpop.f32.mrb[0].mxu0
    %v1203 = vadd.f32 %v69, %v1202
    %v1204 = vpop.f32.mrb[0].mxu0
    %1205 = vmatprep.mubr.f32.mxu0 0.0
    %1206 = vmatmul.mubr.f32.gmra.mrb[0].mxu0 %v1130
    %v1207 = vpop.f32.mrb[0].mxu0
    %v1208 = vadd.f32 %v70, %v1207
    %v1209 = vpop.f32.mrb[0].mxu0
    %1210 = vdwg.mxu0
    %v1211 = vsel %vm174, %v1203, -inf
    %1212 = vmax.xlane.f32.xlu0 %v1211
    %v1213 = vpop.xlane.xlu0 %1212
    %v1214 = vsel %vm174, %v1208, -inf
    %1215 = vmax.xlane.f32.xlu0 %v1214
    %v1216 = vpop.xlane.xlu0 %1215
    %v1217 = vsub.f32 %v1203, %v1213
    %v1218 = vsub.f32 %v1208, %v1216
    %v1219 = vmul.f32 %v1217, 1.442695
    %v1220 = vpow.pop %v1219
    %v1221 = vmul.f32 %v1218, 1.442695
    %v1222 = vpow.pop %v1221
    %v1223 = vsel %vm174, %v1220, 0.0
    %1224 = vadd.xlane.f32.xlu0 %v1223
    %v1225 = vpop.xlane.xlu0 %1224
    %v1226 = vsel %vm174, %v1222, 0.0
    %1227 = vadd.xlane.f32.xlu0 %v1226
    %v1228 = vpop.xlane.xlu0 %1227
    %v1229 = vrcp.pop %v1225
    %v1230 = vrcp.pop %v1228
    %v1231 = vmul.f32 %v1220, %v1229
    %v1232 = vmul.f32 %v1222, %v1230
    %1233 = vrot.lane.b32.xlu0 %v1109, 64
    %v1234 = vpop.permute.xlu0 %1233
    %1235 = vrot.lane.b32.xlu0 %v1114, 64
    %v1236 = vpop.permute.xlu0 %1235
    %v1240 = vsel %vm174, %v1231, 0
    %v1243 = vsel %vm174, %v1232, 0
    %1245 = vmatprep.subr.mxu0 0.0
    %1246 = vmatpush1.msra.mxu0 %v1234
    %1247 = vmatprep.subr.mxu0 0.0
    %1248 = vmatpush1.msra.mxu0 %v1236
    %1249 = vmatprep.subr.mxu0 0.0
    %1250 = vmatpush1.msra.mxu0 0.0
    %1251 = vmatprep.subr.mxu0 0.0
    %1252 = vmatpush1.msra.mxu0 0.0
    %1253 = vmatprep.subr.mxu0 0.0
    %1254 = vmatpush1.msra.mxu0 0.0
    %1255 = vmatprep.subr.mxu0 0.0
    %1256 = vmatpush1.msra.mxu0 0.0
    %1257 = vmatprep.subr.mxu0 0.0
    %1258 = vmatpush1.msra.mxu0 0.0
    %1259 = vmatprep.subr.mxu0 0.0
    %1260 = vmatpush1.msra.mxu0 0.0
    %1261 = vmatprep.subr.mxu0 0.0
    %1262 = vmatpush1.msra.mxu0 0.0
    %1263 = vmatprep.subr.mxu0 0.0
    %1264 = vmatpush1.msra.mxu0 0.0
    %1265 = vmatprep.subr.mxu0 0.0
    %1266 = vmatpush1.msra.mxu0 0.0
    %1267 = vmatprep.subr.mxu0 0.0
    %1268 = vmatpush1.msra.mxu0 0.0
    %1269 = vmatprep.subr.mxu0 0.0
    %1270 = vmatpush1.msra.mxu0 0.0
    %1271 = vmatprep.subr.mxu0 0.0
    %1272 = vmatpush1.msra.mxu0 0.0
    %1273 = vmatprep.subr.mxu0 0.0
    %1274 = vmatpush1.msra.mxu0 0.0
    %1275 = vmatprep.subr.mxu0 0.0
    %1276 = vmatpush1.msra.mxu0 0.0
    %1277 = vmatprep.subr.mxu0 0.0
    %1278 = vmatpush1.msra.mxu0 0.0
    %1279 = vmatprep.subr.mxu0 0.0
    %1280 = vmatpush1.msra.mxu0 0.0
    %1281 = vmatprep.subr.mxu0 0.0
    %1282 = vmatpush1.msra.mxu0 0.0
    %1283 = vmatprep.subr.mxu0 0.0
    %1284 = vmatpush1.msra.mxu0 0.0
    %1285 = vmatprep.subr.mxu0 0.0
    %1286 = vmatpush1.msra.mxu0 0.0
    %1287 = vmatprep.subr.mxu0 0.0
    %1288 = vmatpush1.msra.mxu0 0.0
    %1289 = vmatprep.subr.mxu0 0.0
    %1290 = vmatpush1.msra.mxu0 0.0
    %1291 = vmatprep.subr.mxu0 0.0
    %1292 = vmatpush1.msra.mxu0 0.0
    %1293 = vmatprep.subr.mxu0 0.0
    %1294 = vmatpush1.msra.mxu0 0.0
    %1295 = vmatprep.subr.mxu0 0.0
    %1296 = vmatpush1.msra.mxu0 0.0
    %1297 = vmatprep.subr.mxu0 0.0
    %1298 = vmatpush1.msra.mxu0 0.0
    %1299 = vmatprep.subr.mxu0 0.0
    %1300 = vmatpush1.msra.mxu0 0.0
    %1301 = vmatprep.subr.mxu0 0.0
    %1302 = vmatpush1.msra.mxu0 0.0
    %1303 = vmatprep.subr.mxu0 0.0
    %1304 = vmatpush1.msra.mxu0 0.0
    %1305 = vmatprep.subr.mxu0 0.0
    %1306 = vmatpush1.msra.mxu0 0.0
    %1307 = vmatprep.subr.mxu0 0.0
    %1308 = vmatpush1.msra.mxu0 0.0
    %1309 = vmatprep.mubr.f32.mxu0 0.0
    %1310 = vmatmul.mubr.f32.gmra.mrb[0].mxu0 %v1240
    %v1311 = vpop.f32.mrb[0].mxu0
    %v1312 = vadd.f32 0.0, %v1311
    %v1313 = vpop.f32.mrb[0].mxu0
    %1314 = vmatprep.mubr.f32.mxu0 0.0
    %1315 = vmatmul.mubr.f32.gmra.mrb[0].mxu0 %v1243
    %v1316 = vpop.f32.mrb[0].mxu0
    %v1317 = vadd.f32 0.0, %v1316
    %v1318 = vpop.f32.mrb[0].mxu0
    %1319 = vdwg.mxu0
    %1320 = vrot.lane.b32.xlu0 %v1109, 112
    %v1321 = vpop.permute.xlu0 %1320
    %1322 = vrot.lane.b32.xlu0 %v1114, 112
    %v1323 = vpop.permute.xlu0 %1322
    %1324 = vrot.lane.b32.xlu0 %v1109, 80
    %v1325 = vpop.permute.xlu0 %1324
    %1326 = vrot.lane.b32.xlu0 %v1114, 80
    %v1327 = vpop.permute.xlu0 %1326
    %v1328 = vsel %vm174, %v1321, 0
    %v1330 = vsel %vm174, %v1323, 0
    %v1332 = vsel %vm174, %v1325, 0
    %v1334 = vsel %vm174, %v1327, 0
    %1336 = vmatprep.subr.mxu0 0.0
    %1337 = vmatpush1.xpose.msra.mxu0 %v1332
    %1338 = vmatprep.subr.mxu0 0.0
    %1339 = vmatpush1.xpose.msra.mxu0 %v1334
    %1340 = vmatprep.subr.mxu0 0.0
    %1341 = vmatpush1.xpose.msra.mxu0 0.0
    %1342 = vmatprep.subr.mxu0 0.0
    %1343 = vmatpush1.xpose.msra.mxu0 0.0
    %1344 = vmatprep.subr.mxu0 0.0
    %1345 = vmatpush1.xpose.msra.mxu0 0.0
    %1346 = vmatprep.subr.mxu0 0.0
    %1347 = vmatpush1.xpose.msra.mxu0 0.0
    %1348 = vmatprep.subr.mxu0 0.0
    %1349 = vmatpush1.xpose.msra.mxu0 0.0
    %1350 = vmatprep.subr.mxu0 0.0
    %1351 = vmatpush1.xpose.msra.mxu0 0.0
    %1352 = vmatprep.subr.mxu0 0.0
    %1353 = vmatpush1.xpose.msra.mxu0 0.0
    %1354 = vmatprep.subr.mxu0 0.0
    %1355 = vmatpush1.xpose.msra.mxu0 0.0
    %1356 = vmatprep.subr.mxu0 0.0
    %1357 = vmatpush1.xpose.msra.mxu0 0.0
    %1358 = vmatprep.subr.mxu0 0.0
    %1359 = vmatpush1.xpose.msra.mxu0 0.0
    %1360 = vmatprep.subr.mxu0 0.0
    %1361 = vmatpush1.xpose.msra.mxu0 0.0
    %1362 = vmatprep.subr.mxu0 0.0
    %1363 = vmatpush1.xpose.msra.mxu0 0.0
    %1364 = vmatprep.subr.mxu0 0.0
    %1365 = vmatpush1.xpose.msra.mxu0 0.0
    %1366 = vmatprep.subr.mxu0 0.0
    %1367 = vmatpush1.xpose.msra.mxu0 0.0
    %1368 = vmatprep.subr.mxu0 0.0
    %1369 = vmatpush1.xpose.msra.mxu0 0.0
    %1370 = vmatprep.subr.mxu0 0.0
    %1371 = vmatpush1.xpose.msra.mxu0 0.0
    %1372 = vmatprep.subr.mxu0 0.0
    %1373 = vmatpush1.xpose.msra.mxu0 0.0
    %1374 = vmatprep.subr.mxu0 0.0
    %1375 = vmatpush1.xpose.msra.mxu0 0.0
    %1376 = vmatprep.subr.mxu0 0.0
    %1377 = vmatpush1.xpose.msra.mxu0 0.0
    %1378 = vmatprep.subr.mxu0 0.0
    %1379 = vmatpush1.xpose.msra.mxu0 0.0
    %1380 = vmatprep.subr.mxu0 0.0
    %1381 = vmatpush1.xpose.msra.mxu0 0.0
    %1382 = vmatprep.subr.mxu0 0.0
    %1383 = vmatpush1.xpose.msra.mxu0 0.0
    %1384 = vmatprep.subr.mxu0 0.0
    %1385 = vmatpush1.xpose.msra.mxu0 0.0
    %1386 = vmatprep.subr.mxu0 0.0
    %1387 = vmatpush1.xpose.msra.mxu0 0.0
    %1388 = vmatprep.subr.mxu0 0.0
    %1389 = vmatpush1.xpose.msra.mxu0 0.0
    %1390 = vmatprep.subr.mxu0 0.0
    %1391 = vmatpush1.xpose.msra.mxu0 0.0
    %1392 = vmatprep.subr.mxu0 0.0
    %1393 = vmatpush1.xpose.msra.mxu0 0.0
    %1394 = vmatprep.subr.mxu0 0.0
    %1395 = vmatpush1.xpose.msra.mxu0 0.0
    %1396 = vmatprep.subr.mxu0 0.0
    %1397 = vmatpush1.xpose.msra.mxu0 0.0
    %1398 = vmatprep.subr.mxu0 0.0
    %1399 = vmatpush1.xpose.msra.mxu0 0.0
    %1400 = vmatprep.mubr.f32.mxu0 0.0
    %1401 = vmatmul.mubr.f32.gmra.mrb[0].mxu0 %v1328
    %v1402 = vpop.f32.mrb[0].mxu0
    %v1403 = vadd.f32 %v69, %v1402
    %v1404 = vpop.f32.mrb[0].mxu0
    %1405 = vmatprep.mubr.f32.mxu0 0.0
    %1406 = vmatmul.mubr.f32.gmra.mrb[0].mxu0 %v1330
    %v1407 = vpop.f32.mrb[0].mxu0
    %v1408 = vadd.f32 %v70, %v1407
    %v1409 = vpop.f32.mrb[0].mxu0
    %1410 = vdwg.mxu0
    %v1411 = vsel %vm174, %v1403, -inf
    %1412 = vmax.xlane.f32.xlu0 %v1411
    %v1413 = vpop.xlane.xlu0 %1412
    %v1414 = vsel %vm174, %v1408, -inf
    %1415 = vmax.xlane.f32.xlu0 %v1414
    %v1416 = vpop.xlane.xlu0 %1415
    %v1417 = vsub.f32 %v1403, %v1413
    %v1418 = vsub.f32 %v1408, %v1416
    %v1419 = vmul.f32 %v1417, 1.442695
    %v1420 = vpow.pop %v1419
    %v1421 = vmul.f32 %v1418, 1.442695
    %v1422 = vpow.pop %v1421
    %v1423 = vsel %vm174, %v1420, 0.0
    %1424 = vadd.xlane.f32.xlu0 %v1423
    %v1425 = vpop.xlane.xlu0 %1424
    %v1426 = vsel %vm174, %v1422, 0.0
    %1427 = vadd.xlane.f32.xlu0 %v1426
    %v1428 = vpop.xlane.xlu0 %1427
    %v1429 = vrcp.pop %v1425
    %v1430 = vrcp.pop %v1428
    %v1431 = vmul.f32 %v1420, %v1429
    %v1432 = vmul.f32 %v1422, %v1430
    %1433 = vrot.lane.b32.xlu0 %v1109, 48
    %v1434 = vpop.permute.xlu0 %1433
    %1435 = vrot.lane.b32.xlu0 %v1114, 48
    %v1436 = vpop.permute.xlu0 %1435
    %v1440 = vsel %vm174, %v1431, 0
    %v1443 = vsel %vm174, %v1432, 0
    %1445 = vmatprep.subr.mxu0 0.0
    %1446 = vmatpush1.msra.mxu0 %v1434
    %1447 = vmatprep.subr.mxu0 0.0
    %1448 = vmatpush1.msra.mxu0 %v1436
    %1449 = vmatprep.subr.mxu0 0.0
    %1450 = vmatpush1.msra.mxu0 0.0
    %1451 = vmatprep.subr.mxu0 0.0
    %1452 = vmatpush1.msra.mxu0 0.0
    %1453 = vmatprep.subr.mxu0 0.0
    %1454 = vmatpush1.msra.mxu0 0.0
    %1455 = vmatprep.subr.mxu0 0.0
    %1456 = vmatpush1.msra.mxu0 0.0
    %1457 = vmatprep.subr.mxu0 0.0
    %1458 = vmatpush1.msra.mxu0 0.0
    %1459 = vmatprep.subr.mxu0 0.0
    %1460 = vmatpush1.msra.mxu0 0.0
    %1461 = vmatprep.subr.mxu0 0.0
    %1462 = vmatpush1.msra.mxu0 0.0
    %1463 = vmatprep.subr.mxu0 0.0
    %1464 = vmatpush1.msra.mxu0 0.0
    %1465 = vmatprep.subr.mxu0 0.0
    %1466 = vmatpush1.msra.mxu0 0.0
    %1467 = vmatprep.subr.mxu0 0.0
    %1468 = vmatpush1.msra.mxu0 0.0
    %1469 = vmatprep.subr.mxu0 0.0
    %1470 = vmatpush1.msra.mxu0 0.0
    %1471 = vmatprep.subr.mxu0 0.0
    %1472 = vmatpush1.msra.mxu0 0.0
    %1473 = vmatprep.subr.mxu0 0.0
    %1474 = vmatpush1.msra.mxu0 0.0
    %1475 = vmatprep.subr.mxu0 0.0
    %1476 = vmatpush1.msra.mxu0 0.0
    %1477 = vmatprep.subr.mxu0 0.0
    %1478 = vmatpush1.msra.mxu0 0.0
    %1479 = vmatprep.subr.mxu0 0.0
    %1480 = vmatpush1.msra.mxu0 0.0
    %1481 = vmatprep.subr.mxu0 0.0
    %1482 = vmatpush1.msra.mxu0 0.0
    %1483 = vmatprep.subr.mxu0 0.0
    %1484 = vmatpush1.msra.mxu0 0.0
    %1485 = vmatprep.subr.mxu0 0.0
    %1486 = vmatpush1.msra.mxu0 0.0
    %1487 = vmatprep.subr.mxu0 0.0
    %1488 = vmatpush1.msra.mxu0 0.0
    %1489 = vmatprep.subr.mxu0 0.0
    %1490 = vmatpush1.msra.mxu0 0.0
    %1491 = vmatprep.subr.mxu0 0.0
    %1492 = vmatpush1.msra.mxu0 0.0
    %1493 = vmatprep.subr.mxu0 0.0
    %1494 = vmatpush1.msra.mxu0 0.0
    %1495 = vmatprep.subr.mxu0 0.0
    %1496 = vmatpush1.msra.mxu0 0.0
    %1497 = vmatprep.subr.mxu0 0.0
    %1498 = vmatpush1.msra.mxu0 0.0
    %1499 = vmatprep.subr.mxu0 0.0
    %1500 = vmatpush1.msra.mxu0 0.0
    %1501 = vmatprep.subr.mxu0 0.0
    %1502 = vmatpush1.msra.mxu0 0.0
    %1503 = vmatprep.subr.mxu0 0.0
    %1504 = vmatpush1.msra.mxu0 0.0
    %1505 = vmatprep.subr.mxu0 0.0
    %1506 = vmatpush1.msra.mxu0 0.0
    %1507 = vmatprep.subr.mxu0 0.0
    %1508 = vmatpush1.msra.mxu0 0.0
    %1509 = vmatprep.mubr.f32.mxu0 0.0
    %1510 = vmatmul.mubr.f32.gmra.mrb[0].mxu0 %v1440
    %v1511 = vpop.f32.mrb[0].mxu0
    %v1512 = vadd.f32 0.0, %v1511
    %v1513 = vpop.f32.mrb[0].mxu0
    %1514 = vmatprep.mubr.f32.mxu0 0.0
    %1515 = vmatmul.mubr.f32.gmra.mrb[0].mxu0 %v1443
    %v1516 = vpop.f32.mrb[0].mxu0
    %v1517 = vadd.f32 0.0, %v1516
    %v1518 = vpop.f32.mrb[0].mxu0
    %1519 = vdwg.mxu0
    %v1521 = vsel %vm174, %v1512, 0
    %v1524 = vsel %vm174, %v1517, 0
    %1526 = vmatprep.subr.mxu0 0.0
    %1527 = vmatpush1.msra.mxu0 %v1120
    %1528 = vmatprep.subr.mxu0 0.0
    %1529 = vmatpush1.msra.mxu0 %v1121
    %1530 = vmatprep.subr.mxu0 0.0
    %1531 = vmatpush1.msra.mxu0 0.0
    %1532 = vmatprep.subr.mxu0 0.0
    %1533 = vmatpush1.msra.mxu0 0.0
    %1534 = vmatprep.subr.mxu0 0.0
    %1535 = vmatpush1.msra.mxu0 0.0
    %1536 = vmatprep.subr.mxu0 0.0
    %1537 = vmatpush1.msra.mxu0 0.0
    %1538 = vmatprep.subr.mxu0 0.0
    %1539 = vmatpush1.msra.mxu0 0.0
    %1540 = vmatprep.subr.mxu0 0.0
    %1541 = vmatpush1.msra.mxu0 0.0
    %1542 = vmatprep.subr.mxu0 0.0
    %1543 = vmatpush1.msra.mxu0 0.0
    %1544 = vmatprep.subr.mxu0 0.0
    %1545 = vmatpush1.msra.mxu0 0.0
    %1546 = vmatprep.subr.mxu0 0.0
    %1547 = vmatpush1.msra.mxu0 0.0
    %1548 = vmatprep.subr.mxu0 0.0
    %1549 = vmatpush1.msra.mxu0 0.0
    %1550 = vmatprep.subr.mxu0 0.0
    %1551 = vmatpush1.msra.mxu0 0.0
    %1552 = vmatprep.subr.mxu0 0.0
    %1553 = vmatpush1.msra.mxu0 0.0
    %1554 = vmatprep.subr.mxu0 0.0
    %1555 = vmatpush1.msra.mxu0 0.0
    %1556 = vmatprep.subr.mxu0 0.0
    %1557 = vmatpush1.msra.mxu0 0.0
    %1558 = vmatprep.subr.mxu0 0.0
    %1559 = vmatpush1.msra.mxu0 0.0
    %1560 = vmatprep.subr.mxu0 0.0
    %1561 = vmatpush1.msra.mxu0 0.0
    %1562 = vmatprep.subr.mxu0 0.0
    %1563 = vmatpush1.msra.mxu0 0.0
    %1564 = vmatprep.subr.mxu0 0.0
    %1565 = vmatpush1.msra.mxu0 0.0
    %1566 = vmatprep.subr.mxu0 0.0
    %1567 = vmatpush1.msra.mxu0 0.0
    %1568 = vmatprep.subr.mxu0 0.0
    %1569 = vmatpush1.msra.mxu0 0.0
    %1570 = vmatprep.subr.mxu0 0.0
    %1571 = vmatpush1.msra.mxu0 0.0
    %1572 = vmatprep.subr.mxu0 0.0
    %1573 = vmatpush1.msra.mxu0 0.0
    %1574 = vmatprep.subr.mxu0 0.0
    %1575 = vmatpush1.msra.mxu0 0.0
    %1576 = vmatprep.subr.mxu0 0.0
    %1577 = vmatpush1.msra.mxu0 0.0
    %1578 = vmatprep.subr.mxu0 0.0
    %1579 = vmatpush1.msra.mxu0 0.0
    %1580 = vmatprep.subr.mxu0 0.0
    %1581 = vmatpush1.msra.mxu0 0.0
    %1582 = vmatprep.subr.mxu0 0.0
    %1583 = vmatpush1.msra.mxu0 0.0
    %1584 = vmatprep.subr.mxu0 0.0
    %1585 = vmatpush1.msra.mxu0 0.0
    %1586 = vmatprep.subr.mxu0 0.0
    %1587 = vmatpush1.msra.mxu0 0.0
    %1588 = vmatprep.subr.mxu0 0.0
    %1589 = vmatpush1.msra.mxu0 0.0
    %1590 = vmatprep.mubr.f32.mxu0 0.0
    %1591 = vmatmul.mubr.f32.gmra.mrb[0].mxu0 %v1521
    %v1592 = vpop.f32.mrb[0].mxu0
    %v1593 = vadd.f32 0.0, %v1592
    %v1594 = vpop.f32.mrb[0].mxu0
    %1595 = vmatprep.mubr.f32.mxu0 0.0
    %1596 = vmatmul.mubr.f32.gmra.mrb[0].mxu0 %v1524
    %v1597 = vpop.f32.mrb[0].mxu0
    %v1598 = vadd.f32 0.0, %v1597
    %v1599 = vpop.f32.mrb[0].mxu0
    %1600 = vdwg.mxu0
    %v1602 = vsel %vm174, %v1312, 0
    %v1605 = vsel %vm174, %v1317, 0
    %1607 = vmatprep.subr.mxu0 0.0
    %1608 = vmatpush1.msra.mxu0 %v1118
    %1609 = vmatprep.subr.mxu0 0.0
    %1610 = vmatpush1.msra.mxu0 %v1119
    %1611 = vmatprep.subr.mxu0 0.0
    %1612 = vmatpush1.msra.mxu0 0.0
    %1613 = vmatprep.subr.mxu0 0.0
    %1614 = vmatpush1.msra.mxu0 0.0
    %1615 = vmatprep.subr.mxu0 0.0
    %1616 = vmatpush1.msra.mxu0 0.0
    %1617 = vmatprep.subr.mxu0 0.0
    %1618 = vmatpush1.msra.mxu0 0.0
    %1619 = vmatprep.subr.mxu0 0.0
    %1620 = vmatpush1.msra.mxu0 0.0
    %1621 = vmatprep.subr.mxu0 0.0
    %1622 = vmatpush1.msra.mxu0 0.0
    %1623 = vmatprep.subr.mxu0 0.0
    %1624 = vmatpush1.msra.mxu0 0.0
    %1625 = vmatprep.subr.mxu0 0.0
    %1626 = vmatpush1.msra.mxu0 0.0
    %1627 = vmatprep.subr.mxu0 0.0
    %1628 = vmatpush1.msra.mxu0 0.0
    %1629 = vmatprep.subr.mxu0 0.0
    %1630 = vmatpush1.msra.mxu0 0.0
    %1631 = vmatprep.subr.mxu0 0.0
    %1632 = vmatpush1.msra.mxu0 0.0
    %1633 = vmatprep.subr.mxu0 0.0
    %1634 = vmatpush1.msra.mxu0 0.0
    %1635 = vmatprep.subr.mxu0 0.0
    %1636 = vmatpush1.msra.mxu0 0.0
    %1637 = vmatprep.subr.mxu0 0.0
    %1638 = vmatpush1.msra.mxu0 0.0
    %1639 = vmatprep.subr.mxu0 0.0
    %1640 = vmatpush1.msra.mxu0 0.0
    %1641 = vmatprep.subr.mxu0 0.0
    %1642 = vmatpush1.msra.mxu0 0.0
    %1643 = vmatprep.subr.mxu0 0.0
    %1644 = vmatpush1.msra.mxu0 0.0
    %1645 = vmatprep.subr.mxu0 0.0
    %1646 = vmatpush1.msra.mxu0 0.0
    %1647 = vmatprep.subr.mxu0 0.0
    %1648 = vmatpush1.msra.mxu0 0.0
    %1649 = vmatprep.subr.mxu0 0.0
    %1650 = vmatpush1.msra.mxu0 0.0
    %1651 = vmatprep.subr.mxu0 0.0
    %1652 = vmatpush1.msra.mxu0 0.0
    %1653 = vmatprep.subr.mxu0 0.0
    %1654 = vmatpush1.msra.mxu0 0.0
    %1655 = vmatprep.subr.mxu0 0.0
    %1656 = vmatpush1.msra.mxu0 0.0
    %1657 = vmatprep.subr.mxu0 0.0
    %1658 = vmatpush1.msra.mxu0 0.0
    %1659 = vmatprep.subr.mxu0 0.0
    %1660 = vmatpush1.msra.mxu0 0.0
    %1661 = vmatprep.subr.mxu0 0.0
    %1662 = vmatpush1.msra.mxu0 0.0
    %1663 = vmatprep.subr.mxu0 0.0
    %1664 = vmatpush1.msra.mxu0 0.0
    %1665 = vmatprep.subr.mxu0 0.0
    %1666 = vmatpush1.msra.mxu0 0.0
    %1667 = vmatprep.subr.mxu0 0.0
    %1668 = vmatpush1.msra.mxu0 0.0
    %1669 = vmatprep.subr.mxu0 0.0
    %1670 = vmatpush1.msra.mxu0 0.0
    %1671 = vmatprep.mubr.f32.mxu0 0.0
    %1672 = vmatmul.mubr.f32.gmra.mrb[0].mxu0 %v1602
    %v1673 = vpop.f32.mrb[0].mxu0
    %v1674 = vadd.f32 %v1593, %v1673
    %v1675 = vpop.f32.mrb[0].mxu0
    %1676 = vmatprep.mubr.f32.mxu0 0.0
    %1677 = vmatmul.mubr.f32.gmra.mrb[0].mxu0 %v1605
    %v1678 = vpop.f32.mrb[0].mxu0
    %v1679 = vadd.f32 %v1598, %v1678
    %v1680 = vpop.f32.mrb[0].mxu0
    %1681 = vdwg.mxu0
    %s1682 = scalar_lea.vmem %s6, 1
    %v1683 = vld [vmem:[%s1682] sm:$0x1]
    %v1685 = vlaneseq
    %v1686 = vshrl.u32 %v1685, 7
    %v1687 = vsub.s32 0, %v1686
    %v1688 = vrot.slane %v1683, %v1687
    %v1690 = vadd.f32 %v1674, %v1688
    %v1691 = vadd.f32 %v1679, %v1688
    %v1692 = vadd.f32 %v1021, %v1690
    %v1693 = vadd.f32 %v1022, %v1691
    %s1694 = scalar_lea.vmem %s7, 1
    %v1695 = vld [vmem:[%s1694] sm:$0x1]
    %s1696 = scalar_lea.vmem %s8, 1
    %v1697 = vld [vmem:[%s1696] sm:$0x1]
    %v1698 = vsel %vm82, %v1692, 0.0
    %1699 = vadd.xlane.f32.xlu0 %v1698
    %v1700 = vpop.xlane.xlu0 %1699
    %v1701 = vsel %vm82, %v1693, 0.0
    %1702 = vadd.xlane.f32.xlu0 %v1701
    %v1703 = vpop.xlane.xlu0 %1702
    %v1704 = vmul.f32 %v1700, %v748
    %v1705 = vmul.f32 %v1703, %v748
    %v1706 = vsub.f32 %v1692, %v1704
    %v1707 = vsub.f32 %v1693, %v1705
    %v1708 = vmul.f32 %v1706, %v1706
    %v1709 = vmul.f32 %v1707, %v1707
    %v1710 = vsel %vm82, %v1708, 0.0
    %1711 = vadd.xlane.f32.xlu0 %v1710
    %v1712 = vpop.xlane.xlu0 %1711
    %v1713 = vsel %vm82, %v1709, 0.0
    %1714 = vadd.xlane.f32.xlu0 %v1713
    %v1715 = vpop.xlane.xlu0 %1714
    %v1716 = vmul.f32 %v1712, %v748
    %v1717 = vmul.f32 %v1715, %v748
    %v1718 = vadd.f32 %v1716, 1e-05
    %v1719 = vadd.f32 %v1717, 1e-05
    %v1720 = vrsqrt.pop %v1718
    %v1721 = vrsqrt.pop %v1719
    %v1722 = vmul.f32 %v1706, %v1720
    %v1723 = vmul.f32 %v1707, %v1721
    %v1725 = vlaneseq
    %v1726 = vshrl.u32 %v1725, 7
    %v1727 = vsub.s32 0, %v1726
    %v1728 = vrot.slane %v1695, %v1727
    %v1730 = vmul.f32 %v1722, %v1728
    %v1731 = vmul.f32 %v1723, %v1728
    %v1733 = vlaneseq
    %v1734 = vshrl.u32 %v1733, 7
    %v1735 = vsub.s32 0, %v1734
    %v1736 = vrot.slane %v1697, %v1735
    %v1738 = vadd.f32 %v1730, %v1736
    %v1739 = vadd.f32 %v1731, %v1736
    %s1740 = scalar_lea.vmem %s9, 32
    %v1741 = vld [vmem:[%s1740] sm:$0xff]
    %v1742 = vld [vmem:[%s1740 + $0x8] sm:$0xff]
    %v1743 = vld [vmem:[%s1740 + $0x10] sm:$0xff]
    %v1744 = vld [vmem:[%s1740 + $0x18] sm:$0xff]
    %s1745 = scalar_lea.vmem %s10, 1
    %v1746 = vld [vmem:[%s1745] sm:$0x1]
    %v1748 = vlaneseq
    %v1749 = vshrl.u32 %v1748, 7
    %v1750 = vsub.s32 0, %v1749
    %v1751 = vrot.slane %v1746, %v1750
    %v1754 = vsel %vm82, %v1738, 0
    %v1757 = vsel %vm82, %v1739, 0
    %1759 = vmatprep.subr.mxu0 0.0
    %1760 = vmatpush1.msra.mxu0 %v1741
    %1761 = vmatprep.subr.mxu0 0.0
    %1762 = vmatpush1.msra.mxu0 %v1742
    %1763 = vmatprep.subr.mxu0 0.0
    %1764 = vmatpush1.msra.mxu0 %v1743
    %1765 = vmatprep.subr.mxu0 0.0
    %1766 = vmatpush1.msra.mxu0 %v1744
    %1767 = vmatprep.subr.mxu0 0.0
    %1768 = vmatpush1.msra.mxu0 0.0
    %1769 = vmatprep.subr.mxu0 0.0
    %1770 = vmatpush1.msra.mxu0 0.0
    %1771 = vmatprep.subr.mxu0 0.0
    %1772 = vmatpush1.msra.mxu0 0.0
    %1773 = vmatprep.subr.mxu0 0.0
    %1774 = vmatpush1.msra.mxu0 0.0
    %1775 = vmatprep.subr.mxu0 0.0
    %1776 = vmatpush1.msra.mxu0 0.0
    %1777 = vmatprep.subr.mxu0 0.0
    %1778 = vmatpush1.msra.mxu0 0.0
    %1779 = vmatprep.subr.mxu0 0.0
    %1780 = vmatpush1.msra.mxu0 0.0
    %1781 = vmatprep.subr.mxu0 0.0
    %1782 = vmatpush1.msra.mxu0 0.0
    %1783 = vmatprep.subr.mxu0 0.0
    %1784 = vmatpush1.msra.mxu0 0.0
    %1785 = vmatprep.subr.mxu0 0.0
    %1786 = vmatpush1.msra.mxu0 0.0
    %1787 = vmatprep.subr.mxu0 0.0
    %1788 = vmatpush1.msra.mxu0 0.0
    %1789 = vmatprep.subr.mxu0 0.0
    %1790 = vmatpush1.msra.mxu0 0.0
    %1791 = vmatprep.subr.mxu0 0.0
    %1792 = vmatpush1.msra.mxu0 0.0
    %1793 = vmatprep.subr.mxu0 0.0
    %1794 = vmatpush1.msra.mxu0 0.0
    %1795 = vmatprep.subr.mxu0 0.0
    %1796 = vmatpush1.msra.mxu0 0.0
    %1797 = vmatprep.subr.mxu0 0.0
    %1798 = vmatpush1.msra.mxu0 0.0
    %1799 = vmatprep.subr.mxu0 0.0
    %1800 = vmatpush1.msra.mxu0 0.0
    %1801 = vmatprep.subr.mxu0 0.0
    %1802 = vmatpush1.msra.mxu0 0.0
    %1803 = vmatprep.subr.mxu0 0.0
    %1804 = vmatpush1.msra.mxu0 0.0
    %1805 = vmatprep.subr.mxu0 0.0
    %1806 = vmatpush1.msra.mxu0 0.0
    %1807 = vmatprep.subr.mxu0 0.0
    %1808 = vmatpush1.msra.mxu0 0.0
    %1809 = vmatprep.subr.mxu0 0.0
    %1810 = vmatpush1.msra.mxu0 0.0
    %1811 = vmatprep.subr.mxu0 0.0
    %1812 = vmatpush1.msra.mxu0 0.0
    %1813 = vmatprep.subr.mxu0 0.0
    %1814 = vmatpush1.msra.mxu0 0.0
    %1815 = vmatprep.subr.mxu0 0.0
    %1816 = vmatpush1.msra.mxu0 0.0
    %1817 = vmatprep.subr.mxu0 0.0
    %1818 = vmatpush1.msra.mxu0 0.0
    %1819 = vmatprep.subr.mxu0 0.0
    %1820 = vmatpush1.msra.mxu0 0.0
    %1821 = vmatprep.subr.mxu0 0.0
    %1822 = vmatpush1.msra.mxu0 0.0
    %1823 = vmatprep.mubr.f32.mxu0 0.0
    %1824 = vmatmul.mubr.f32.gmra.mrb[0].mxu0 %v1754
    %v1825 = vpop.f32.mrb[0].mxu0
    %v1826 = vadd.f32 %v1751, %v1825
    %v1827 = vpop.f32.mrb[0].mxu0
    %1828 = vmatprep.mubr.f32.mxu0 0.0
    %1829 = vmatmul.mubr.f32.gmra.mrb[0].mxu0 %v1757
    %v1830 = vpop.f32.mrb[0].mxu0
    %v1831 = vadd.f32 %v1751, %v1830
    %v1832 = vpop.f32.mrb[0].mxu0
    %1833 = vdwg.mxu0
    %v1834 = vmax.f32 %v1826, 0.0
    %v1835 = vmax.f32 %v1831, 0.0
    %s1836 = scalar_lea.vmem %s11, 128
    %v1837 = vld [vmem:[%s1836] sm:$0xff]
    %v1838 = vld [vmem:[%s1836 + $0x8] sm:$0xff]
    %v1839 = vld [vmem:[%s1836 + $0x10] sm:$0xff]
    %v1840 = vld [vmem:[%s1836 + $0x18] sm:$0xff]
    %v1841 = vld [vmem:[%s1836 + $0x20] sm:$0xff]
    %v1842 = vld [vmem:[%s1836 + $0x28] sm:$0xff]
    %v1843 = vld [vmem:[%s1836 + $0x30] sm:$0xff]
    %v1844 = vld [vmem:[%s1836 + $0x38] sm:$0xff]
    %v1845 = vld [vmem:[%s1836 + $0x40] sm:$0xff]
    %v1846 = vld [vmem:[%s1836 + $0x48] sm:$0xff]
    %v1847 = vld [vmem:[%s1836 + $0x50] sm:$0xff]
    %v1848 = vld [vmem:[%s1836 + $0x58] sm:$0xff]
    %v1849 = vld [vmem:[%s1836 + $0x60] sm:$0xff]
    %v1850 = vld [vmem:[%s1836 + $0x68] sm:$0xff]
    %v1851 = vld [vmem:[%s1836 + $0x70] sm:$0xff]
    %v1852 = vld [vmem:[%s1836 + $0x78] sm:$0xff]
    %s1853 = scalar_lea.vmem %s12, 1
    %v1854 = vld [vmem:[%s1853] sm:$0x1]
    %v1856 = vlaneseq
    %v1857 = vshrl.u32 %v1856, 7
    %v1858 = vsub.s32 0, %v1857
    %v1859 = vrot.slane %v1854, %v1858
    %1861 = vmatprep.subr.mxu0 0.0
    %1862 = vmatpush1.msra.mxu0 %v1837
    %1863 = vmatprep.subr.mxu0 0.0
    %1864 = vmatpush1.msra.mxu0 %v1838
    %1865 = vmatprep.subr.mxu0 0.0
    %1866 = vmatpush1.msra.mxu0 %v1839
    %1867 = vmatprep.subr.mxu0 0.0
    %1868 = vmatpush1.msra.mxu0 %v1840
    %1869 = vmatprep.subr.mxu0 0.0
    %1870 = vmatpush1.msra.mxu0 %v1841
    %1871 = vmatprep.subr.mxu0 0.0
    %1872 = vmatpush1.msra.mxu0 %v1842
    %1873 = vmatprep.subr.mxu0 0.0
    %1874 = vmatpush1.msra.mxu0 %v1843
    %1875 = vmatprep.subr.mxu0 0.0
    %1876 = vmatpush1.msra.mxu0 %v1844
    %1877 = vmatprep.subr.mxu0 0.0
    %1878 = vmatpush1.msra.mxu0 %v1845
    %1879 = vmatprep.subr.mxu0 0.0
    %1880 = vmatpush1.msra.mxu0 %v1846
    %1881 = vmatprep.subr.mxu0 0.0
    %1882 = vmatpush1.msra.mxu0 %v1847
    %1883 = vmatprep.subr.mxu0 0.0
    %1884 = vmatpush1.msra.mxu0 %v1848
    %1885 = vmatprep.subr.mxu0 0.0
    %1886 = vmatpush1.msra.mxu0 %v1849
    %1887 = vmatprep.subr.mxu0 0.0
    %1888 = vmatpush1.msra.mxu0 %v1850
    %1889 = vmatprep.subr.mxu0 0.0
    %1890 = vmatpush1.msra.mxu0 %v1851
    %1891 = vmatprep.subr.mxu0 0.0
    %1892 = vmatpush1.msra.mxu0 %v1852
    %1893 = vmatprep.subr.mxu0 0.0
    %1894 = vmatpush1.msra.mxu0 0.0
    %1895 = vmatprep.subr.mxu0 0.0
    %1896 = vmatpush1.msra.mxu0 0.0
    %1897 = vmatprep.subr.mxu0 0.0
    %1898 = vmatpush1.msra.mxu0 0.0
    %1899 = vmatprep.subr.mxu0 0.0
    %1900 = vmatpush1.msra.mxu0 0.0
    %1901 = vmatprep.subr.mxu0 0.0
    %1902 = vmatpush1.msra.mxu0 0.0
    %1903 = vmatprep.subr.mxu0 0.0
    %1904 = vmatpush1.msra.mxu0 0.0
    %1905 = vmatprep.subr.mxu0 0.0
    %1906 = vmatpush1.msra.mxu0 0.0
    %1907 = vmatprep.subr.mxu0 0.0
    %1908 = vmatpush1.msra.mxu0 0.0
    %1909 = vmatprep.subr.mxu0 0.0
    %1910 = vmatpush1.msra.mxu0 0.0
    %1911 = vmatprep.subr.mxu0 0.0
    %1912 = vmatpush1.msra.mxu0 0.0
    %1913 = vmatprep.subr.mxu0 0.0
    %1914 = vmatpush1.msra.mxu0 0.0
    %1915 = vmatprep.subr.mxu0 0.0
    %1916 = vmatpush1.msra.mxu0 0.0
    %1917 = vmatprep.subr.mxu0 0.0
    %1918 = vmatpush1.msra.mxu0 0.0
    %1919 = vmatprep.subr.mxu0 0.0
    %1920 = vmatpush1.msra.mxu0 0.0
    %1921 = vmatprep.subr.mxu0 0.0
    %1922 = vmatpush1.msra.mxu0 0.0
    %1923 = vmatprep.subr.mxu0 0.0
    %1924 = vmatpush1.msra.mxu0 0.0
    %1925 = vmatprep.mubr.f32.mxu0 0.0
    %1926 = vmatmul.mubr.f32.gmra.mrb[0].mxu0 %v1834
    %v1927 = vpop.f32.mrb[0].mxu0
    %v1928 = vadd.f32 %v1859, %v1927
    %v1929 = vpop.f32.mrb[0].mxu0
    %1930 = vmatprep.mubr.f32.mxu0 0.0
    %1931 = vmatmul.mubr.f32.gmra.mrb[0].mxu0 %v1835
    %v1932 = vpop.f32.mrb[0].mxu0
    %v1933 = vadd.f32 %v1859, %v1932
    %v1934 = vpop.f32.mrb[0].mxu0
    %1935 = vdwg.mxu0
    %v1936 = vadd.f32 %v1738, %v1928
    %v1937 = vadd.f32 %v1739, %v1933
    %s1938 = scalar_lea.vmem %s13, 1
    %v1939 = vld [vmem:[%s1938] sm:$0x1]
    %s1940 = scalar_lea.vmem %s14, 1
    %v1941 = vld [vmem:[%s1940] sm:$0x1]
    %v1942 = vsel %vm82, %v1936, 0.0
    %1943 = vadd.xlane.f32.xlu0 %v1942
    %v1944 = vpop.xlane.xlu0 %1943
    %v1945 = vsel %vm82, %v1937, 0.0
    %1946 = vadd.xlane.f32.xlu0 %v1945
    %v1947 = vpop.xlane.xlu0 %1946
    %v1948 = vmul.f32 %v1944, %v748
    %v1949 = vmul.f32 %v1947, %v748
    %v1950 = vsub.f32 %v1936, %v1948
    %v1951 = vsub.f32 %v1937, %v1949
    %v1952 = vmul.f32 %v1950, %v1950
    %v1953 = vmul.f32 %v1951, %v1951
    %v1954 = vsel %vm82, %v1952, 0.0
    %1955 = vadd.xlane.f32.xlu0 %v1954
    %v1956 = vpop.xlane.xlu0 %1955
    %v1957 = vsel %vm82, %v1953, 0.0
    %1958 = vadd.xlane.f32.xlu0 %v1957
    %v1959 = vpop.xlane.xlu0 %1958
    %v1960 = vmul.f32 %v1956, %v748
    %v1961 = vmul.f32 %v1959, %v748
    %v1962 = vadd.f32 %v1960, 1e-05
    %v1963 = vadd.f32 %v1961, 1e-05
    %v1964 = vrsqrt.pop %v1962
    %v1965 = vrsqrt.pop %v1963
    %v1966 = vmul.f32 %v1950, %v1964
    %v1967 = vmul.f32 %v1951, %v1965
    %v1969 = vlaneseq
    %v1970 = vshrl.u32 %v1969, 7
    %v1971 = vsub.s32 0, %v1970
    %v1972 = vrot.slane %v1939, %v1971
    %v1974 = vmul.f32 %v1966, %v1972
    %v1975 = vmul.f32 %v1967, %v1972
    %v1977 = vlaneseq
    %v1978 = vshrl.u32 %v1977, 7
    %v1979 = vsub.s32 0, %v1978
    %v1980 = vrot.slane %v1941, %v1979
    %v1982 = vadd.f32 %v1974, %v1980
    %v1983 = vadd.f32 %v1975, %v1980
    %v1984 = vld [vmem:[%s15] sm:$0x1]
    %v1985 = vld [vmem:[%s16] sm:$0x1]
    %v1986 = vsel %vm82, %v1982, 0.0
    %1987 = vadd.xlane.f32.xlu0 %v1986
    %v1988 = vpop.xlane.xlu0 %1987
    %v1989 = vsel %vm82, %v1983, 0.0
    %1990 = vadd.xlane.f32.xlu0 %v1989
    %v1991 = vpop.xlane.xlu0 %1990
    %v1992 = vmul.f32 %v1988, %v748
    %v1993 = vmul.f32 %v1991, %v748
    %v1994 = vsub.f32 %v1982, %v1992
    %v1995 = vsub.f32 %v1983, %v1993
    %v1996 = vmul.f32 %v1994, %v1994
    %v1997 = vmul.f32 %v1995, %v1995
    %v1998 = vsel %vm82, %v1996, 0.0
    %1999 = vadd.xlane.f32.xlu0 %v1998
    %v2000 = vpop.xlane.xlu0 %1999
    %v2001 = vsel %vm82, %v1997, 0.0
    %2002 = vadd.xlane.f32.xlu0 %v2001
    %v2003 = vpop.xlane.xlu0 %2002
    %v2004 = vmul.f32 %v2000, %v748
    %v2005 = vmul.f32 %v2003, %v748
    %v2006 = vadd.f32 %v2004, 1e-05
    %v2007 = vadd.f32 %v2005, 1e-05
    %v2008 = vrsqrt.pop %v2006
    %v2009 = vrsqrt.pop %v2007
    %v2010 = vmul.f32 %v1994, %v2008
    %v2011 = vmul.f32 %v1995, %v2009
    %v2013 = vlaneseq
    %v2014 = vshrl.u32 %v2013, 7
    %v2015 = vsub.s32 0, %v2014
    %v2016 = vrot.slane %v1984, %v2015
    %v2018 = vmul.f32 %v2010, %v2016
    %v2019 = vmul.f32 %v2011, %v2016
    %v2021 = vlaneseq
    %v2022 = vshrl.u32 %v2021, 7
    %v2023 = vsub.s32 0, %v2022
    %v2024 = vrot.slane %v1985, %v2023
    %v2026 = vadd.f32 %v2018, %v2024
    %v2027 = vadd.f32 %v2019, %v2024
    %v2028 = vld [vmem:[%s17] sm:$0xff]
    %v2029 = vld [vmem:[%s17 + $0x8] sm:$0xff]
    %v2030 = vld [vmem:[%s17 + $0x10] sm:$0xff]
    %v2031 = vld [vmem:[%s17 + $0x18] sm:$0xff]
    %v2032 = vld [vmem:[%s18] sm:$0x1]
    %v2034 = vlaneseq
    %v2035 = vshrl.u32 %v2034, 7
    %v2036 = vsub.s32 0, %v2035
    %v2037 = vrot.slane %v2032, %v2036
    %v2040 = vsel %vm82, %v2026, 0
    %v2043 = vsel %vm82, %v2027, 0
    %2045 = vmatprep.subr.mxu0 0.0
    %2046 = vmatpush1.msra.mxu0 %v2028
    %2047 = vmatprep.subr.mxu0 0.0
    %2048 = vmatpush1.msra.mxu0 %v2029
    %2049 = vmatprep.subr.mxu0 0.0
    %2050 = vmatpush1.msra.mxu0 %v2030
    %2051 = vmatprep.subr.mxu0 0.0
    %2052 = vmatpush1.msra.mxu0 %v2031
    %2053 = vmatprep.subr.mxu0 0.0
    %2054 = vmatpush1.msra.mxu0 0.0
    %2055 = vmatprep.subr.mxu0 0.0
    %2056 = vmatpush1.msra.mxu0 0.0
    %2057 = vmatprep.subr.mxu0 0.0
    %2058 = vmatpush1.msra.mxu0 0.0
    %2059 = vmatprep.subr.mxu0 0.0
    %2060 = vmatpush1.msra.mxu0 0.0
    %2061 = vmatprep.subr.mxu0 0.0
    %2062 = vmatpush1.msra.mxu0 0.0
    %2063 = vmatprep.subr.mxu0 0.0
    %2064 = vmatpush1.msra.mxu0 0.0
    %2065 = vmatprep.subr.mxu0 0.0
    %2066 = vmatpush1.msra.mxu0 0.0
    %2067 = vmatprep.subr.mxu0 0.0
    %2068 = vmatpush1.msra.mxu0 0.0
    %2069 = vmatprep.subr.mxu0 0.0
    %2070 = vmatpush1.msra.mxu0 0.0
    %2071 = vmatprep.subr.mxu0 0.0
    %2072 = vmatpush1.msra.mxu0 0.0
    %2073 = vmatprep.subr.mxu0 0.0
    %2074 = vmatpush1.msra.mxu0 0.0
    %2075 = vmatprep.subr.mxu0 0.0
    %2076 = vmatpush1.msra.mxu0 0.0
    %2077 = vmatprep.subr.mxu0 0.0
    %2078 = vmatpush1.msra.mxu0 0.0
    %2079 = vmatprep.subr.mxu0 0.0
    %2080 = vmatpush1.msra.mxu0 0.0
    %2081 = vmatprep.subr.mxu0 0.0
    %2082 = vmatpush1.msra.mxu0 0.0
    %2083 = vmatprep.subr.mxu0 0.0
    %2084 = vmatpush1.msra.mxu0 0.0
    %2085 = vmatprep.subr.mxu0 0.0
    %2086 = vmatpush1.msra.mxu0 0.0
    %2087 = vmatprep.subr.mxu0 0.0
    %2088 = vmatpush1.msra.mxu0 0.0
    %2089 = vmatprep.subr.mxu0 0.0
    %2090 = vmatpush1.msra.mxu0 0.0
    %2091 = vmatprep.subr.mxu0 0.0
    %2092 = vmatpush1.msra.mxu0 0.0
    %2093 = vmatprep.subr.mxu0 0.0
    %2094 = vmatpush1.msra.mxu0 0.0
    %2095 = vmatprep.subr.mxu0 0.0
    %2096 = vmatpush1.msra.mxu0 0.0
    %2097 = vmatprep.subr.mxu0 0.0
    %2098 = vmatpush1.msra.mxu0 0.0
    %2099 = vmatprep.subr.mxu0 0.0
    %2100 = vmatpush1.msra.mxu0 0.0
    %2101 = vmatprep.subr.mxu0 0.0
    %2102 = vmatpush1.msra.mxu0 0.0
    %2103 = vmatprep.subr.mxu0 0.0
    %2104 = vmatpush1.msra.mxu0 0.0
    %2105 = vmatprep.subr.mxu0 0.0
    %2106 = vmatpush1.msra.mxu0 0.0
    %2107 = vmatprep.subr.mxu0 0.0
    %2108 = vmatpush1.msra.mxu0 0.0
    %2109 = vmatprep.mubr.f32.mxu0 0.0
    %2110 = vmatmul.mubr.f32.gmra.mrb[0].mxu0 %v2040
    %v2111 = vpop.f32.mrb[0].mxu0
    %v2112 = vadd.f32 %v2037, %v2111
    %v2113 = vpop.f32.mrb[0].mxu0
    %2114 = vmatprep.mubr.f32.mxu0 0.0
    %2115 = vmatmul.mubr.f32.gmra.mrb[0].mxu0 %v2043
    %v2116 = vpop.f32.mrb[0].mxu0
    %v2117 = vadd.f32 %v2037, %v2116
    %v2118 = vpop.f32.mrb[0].mxu0
    %2119 = vdwg.mxu0
    %vm2120 = vcmask 523264
    %2121 = vst.msk [vmem:[#allocation2] sm:$0xff] %vm2120, %v2112
    %2122 = vst.msk [vmem:[#allocation2 + $0x8] sm:$0xff] %vm2120, %v2117
    // Predicated region
    $region78: #{tpu_custom_call.1} parent=1 // pred_check
      _
    $region79: #{tpu_custom_call.1} parent=1 // pred_check_branch
      %2124 = sbr.rel (0) target = $region81
    $region80: #{tpu_custom_call.1} parent=1 // pred_region
      %s2126 = ssub.s32 256, 256
      %2127 = vsyncadd [#allocation3], %s2126
      %s2128 = sshll.u32 [#allocation2], 4
      %s2129 = int_to_ptr.vmem [resolvable:$true] %s2128
      %2134 = dma.vmem_to_hbm [thread:$0]  %s2129, 256, %s19, [#allocation3], 128, 128, 8
    $region81: #{tpu_custom_call.1} parent=1 // pred_fallthru
      _
    // Predicated region
    $region82: #{tpu_custom_call.1} parent=1 // pred_check
      _
    $region83: #{tpu_custom_call.1} parent=1 // pred_check_branch
      %2136 = sbr.rel (0) target = $region85
    $region84: #{tpu_custom_call.1} parent=1 // pred_region
      %2137 = dma.done [#allocation3], 256
    $region85: #{tpu_custom_call.1} parent=1 // pred_fallthru
      _
    %2138 = vsyncpa [#allocation3], 1

</llo_original>
